<compile_context>
chip_gen: v7x
topology: tpu7x:2x2x1
jax: 0.10.0
libtpu: 0.0.40
codegen_flags: <defaults>
</compile_context>

<pallas_src>
import jax
import jax.numpy as jnp
from jax import lax
from jax.experimental import pallas as pl
from jax.experimental.pallas import tpu as pltpu


def seq2seq_kernel(src_oh_ref, mask_ref, attnb_ref, dec0_ref,
                   eih_ref, ewhh_ref, eb_ref,
                   dih_ref, dwhh_ref, db_ref,
                   wcc_ref, wch_ref, bc_ref, wout_ref, bout_ref,
                   out_ref,
                   encgx_ref, enc_sbh_ref, enc_bsh_ref):
    f32 = jnp.float32
    S, Bp, H = enc_sbh_ref.shape
    Tm1, _, V = out_ref.shape
    wdt = ewhh_ref.dtype            # bf16 weights, f32 accumulation on the MXU

    # Bias broadcasts hoisted out of the loops (one vreg each).
    db = jnp.broadcast_to(db_ref[...], (Bp, 4 * H))
    bc = jnp.broadcast_to(bc_ref[...], (Bp, H))
    bout = jnp.broadcast_to(bout_ref[...], (Bp, V))

    def lstm_step(gx, h, c, whh_ref):
        # gx = x @ W_ih (+ bias) is precomputed / done off the h-chain; only
        # the recurrent matmul is serial.
        gates = gx + jnp.dot(h.astype(wdt), whh_ref[...],
                             preferred_element_type=f32)
        i = jax.nn.sigmoid(gates[:, 0 * H:1 * H])
        f = jax.nn.sigmoid(gates[:, 1 * H:2 * H])
        g = jnp.tanh(gates[:, 2 * H:3 * H])
        o = jax.nn.sigmoid(gates[:, 3 * H:4 * H])
        c_new = f * c + i * g
        h_new = o * jnp.tanh(c_new)
        return h_new, c_new

    # ---- encoder: hoisted fused (one-hot -> emb -> W_ih) projection + bias ---
    encgx_ref[...] = (jnp.dot(src_oh_ref[...], eih_ref[...],
                              preferred_element_type=f32)
                      + eb_ref[...])                                    # (S*Bp, 4H)

    def enc_body(t, carry):
        h, c = carry
        row = pl.multiple_of(t * Bp, Bp)
        gx = encgx_ref[pl.ds(row, Bp), :]                               # (Bp, 4H)
        h_new, c_new = lstm_step(gx, h, c, ewhh_ref)
        m = mask_ref[t]                                                 # (Bp, 1)
        h = m * h_new + (1.0 - m) * h
        c = m * c_new + (1.0 - m) * c
        enc_sbh_ref[t] = m * h_new     # zero-padded like pad_packed_sequence
        return h, c

    h0 = jnp.zeros((Bp, H), f32)
    h, c = lax.fori_loop(0, S, enc_body, (h0, h0))

    # Relayout encoder outputs time-major -> batch-major so the attention
    # softmax runs over the lane axis.  Done once, outside the decode loop
    # (static copies; dynamic second-dim stores / leading-dim transposes are
    # not reliably lowered).
    for t in range(S):
        enc_bsh_ref[:, t, :] = enc_sbh_ref[t]

    # ---- decoder: attention + greedy argmax feedback --------------------------
    def dec_body(step, carry):
        h, c, x_oh = carry
        # fused one-hot -> embedding -> W_ih (single MXU op on the serial chain)
        gx = jnp.dot(x_oh, dih_ref[...], preferred_element_type=f32) + db
        h, c = lstm_step(gx, h, c, dwhh_ref)

        # dot-product attention; scores/softmax are lane-dense (Bp, S).
        enc = enc_bsh_ref[...]                                          # (Bp, S, H)
        scores = jnp.sum(enc * h[:, None, :], axis=-1) + attnb_ref[...]  # (Bp, S)
        smax = jnp.max(scores, axis=-1, keepdims=True)
        ex = jnp.exp(scores - smax)
        denom = jnp.maximum(jnp.sum(ex, axis=-1, keepdims=True), 1e-20)  # len-0 guard
        w = ex * pl.reciprocal(denom, approx=True)                      # (Bp, S)
        ctx = jnp.sum(w[:, :, None] * enc, axis=1)                      # (Bp, H)

        # attention combine with W_c split into ctx/h halves (no lane concat).
        attn_h = jnp.tanh(
            jnp.dot(ctx.astype(wdt), wcc_ref[...], preferred_element_type=f32)
            + jnp.dot(h.astype(wdt), wch_ref[...], preferred_element_type=f32)
            + bc)
        logits = jnp.dot(attn_h.astype(wdt), wout_ref[...],
                         preferred_element_type=f32) + bout             # (Bp, V)
        out_ref[step] = logits

        # greedy argmax -> one-hot next input (first maximal index, like torch)
        mmax = jnp.max(logits, axis=-1, keepdims=True)
        lane = lax.broadcasted_iota(jnp.int32, (Bp, V), 1)
        cand = jnp.where(logits >= mmax, lane, jnp.int32(V))
        top1 = jnp.min(cand, axis=-1, keepdims=True)
        x_next = (lane == top1).astype(x_oh.dtype)
        return h, c, x_next

    lax.fori_loop(0, Tm1, dec_body, (h, c, dec0_ref[...]))


def seq2seq_forward(src, src_len, dec, params):
    """src: [S, B] int32, src_len: [B] int32, dec: [T, B] int32 (dec[0]=BOS)."""
    S, B = src.shape
    T = dec.shape[0]
    V, _ = params["emb"].shape
    H = params["ewhh"].shape[0]

    Bp = ((B + 7) // 8) * 8          # pad batch to full sublanes (dense stores)
    pad = Bp - B
    bf = jnp.bfloat16
    f32 = jnp.float32

    src_p = jnp.pad(src, ((0, 0), (0, pad)))
    len_p = jnp.pad(src_len, (0, pad))            # padded rows: length 0 (masked)
    dec0_p = jnp.pad(dec[0], (0, pad))

    src_oh = jax.nn.one_hot(src_p.reshape(-1), V, dtype=bf)             # (S*Bp, V)
    mask_sb = (jnp.arange(S)[:, None] < len_p[None, :]
               ).astype(f32)[:, :, None]                                # (S, Bp, 1)
    attn_bias = jnp.where(jnp.arange(S)[None, :] < len_p[:, None],
                          0.0, -1e9).astype(f32)                        # (Bp, S)
    dec0_oh = jax.nn.one_hot(dec0_p, V, dtype=bf)                       # (Bp, V)

    # Fold embedding into the LSTM input projections (exact for one-hot inputs;
    # one bf16 rounding instead of two, one MXU op instead of two per use).
    enc_in = (params["emb"] @ params["ewih"]).astype(bf)                # (V, 4H)
    dec_in = (params["emb"] @ params["dwih"]).astype(bf)                # (V, 4H)

    args = [
        src_oh, mask_sb, attn_bias, dec0_oh,
        enc_in, params["ewhh"].astype(bf), params["eb"],
        dec_in, params["dwhh"].astype(bf), params["db"],
        params["wc"][:H].astype(bf), params["wc"][H:].astype(bf), params["bc"],
        params["wout"].astype(bf), params["bout"],
    ]

    out = pl.pallas_call(
        seq2seq_kernel,
        out_shape=jax.ShapeDtypeStruct((T - 1, Bp, V), jnp.float32),
        in_specs=[pl.BlockSpec(memory_space=pltpu.MemorySpace.VMEM)] * len(args),
        out_specs=pl.BlockSpec(memory_space=pltpu.MemorySpace.VMEM),
        scratch_shapes=[
            pltpu.VMEM((S * Bp, 4 * H), jnp.float32),   # precomputed enc input gates
            pltpu.VMEM((S, Bp, H), jnp.float32),        # enc outputs, time-major
            pltpu.VMEM((Bp, S, H), jnp.float32),        # enc outputs, batch-major
        ],
    )(*args)

    return out[:, :B, :]


def init_params(key, vocab, emb, hidden):
    ks = jax.random.split(key, 12)
    s = 0.1
    return {
        "emb":  s * jax.random.normal(ks[0], (vocab, emb), jnp.float32),
        # encoder LSTM (gate order i, f, g, o), stored transposed for x @ W
        "ewih": s * jax.random.normal(ks[1], (emb, 4 * hidden), jnp.float32),
        "ewhh": s * jax.random.normal(ks[2], (hidden, 4 * hidden), jnp.float32),
        "eb":   s * jax.random.normal(ks[3], (1, 4 * hidden), jnp.float32),
        # decoder LSTM cell
        "dwih": s * jax.random.normal(ks[4], (emb, 4 * hidden), jnp.float32),
        "dwhh": s * jax.random.normal(ks[5], (hidden, 4 * hidden), jnp.float32),
        "db":   s * jax.random.normal(ks[6], (1, 4 * hidden), jnp.float32),
        # attention combine: tanh(W_c [ctx; h]) -> split into ctx/h halves
        "wc":   s * jax.random.normal(ks[7], (2 * hidden, hidden), jnp.float32),
        "bc":   s * jax.random.normal(ks[8], (1, hidden), jnp.float32),
        # output projection to vocab
        "wout": s * jax.random.normal(ks[9], (hidden, vocab), jnp.float32),
        "bout": s * jax.random.normal(ks[10], (1, vocab), jnp.float32),
    }


if __name__ == "__main__":
    VOCAB, EMB, HID = 128, 32, 32
    S, T, B = 8, 6, 2
    BOS = 1

    key = jax.random.PRNGKey(0)
    kp, ks, kd = jax.random.split(key, 3)

    params = init_params(kp, VOCAB, EMB, HID)
    src = jax.random.randint(ks, (S, B), 2, VOCAB, dtype=jnp.int32)
    src_len = jnp.array([S, S - 3], dtype=jnp.int32)
    dec = jax.random.randint(kd, (T, B), 2, VOCAB, dtype=jnp.int32)
    dec = dec.at[0].set(BOS)

    out = jax.jit(seq2seq_forward)(src, src_len, dec, params)
    out = jax.block_until_ready(out)

    assert out.shape == (T - 1, B, VOCAB), out.shape
    assert bool(jnp.all(jnp.isfinite(out)))
    print("KERNEL_OK")
</pallas_src>

<mosaic_0001>
module attributes {stable_mosaic.version = 11 : i64} {
  func.func @seq2seq_kernel(%arg0: memref<64x128xbf16, #tpu.memory_space<vmem>>, %arg1: memref<8x8x1xf32, #tpu.memory_space<vmem>>, %arg2: memref<8x8xf32, #tpu.memory_space<vmem>>, %arg3: memref<8x128xbf16, #tpu.memory_space<vmem>>, %arg4: memref<128x128xbf16, #tpu.memory_space<vmem>>, %arg5: memref<32x128xbf16, #tpu.memory_space<vmem>>, %arg6: memref<1x128xf32, #tpu.memory_space<vmem>>, %arg7: memref<128x128xbf16, #tpu.memory_space<vmem>>, %arg8: memref<32x128xbf16, #tpu.memory_space<vmem>>, %arg9: memref<1x128xf32, #tpu.memory_space<vmem>>, %arg10: memref<32x32xbf16, #tpu.memory_space<vmem>>, %arg11: memref<32x32xbf16, #tpu.memory_space<vmem>>, %arg12: memref<1x32xf32, #tpu.memory_space<vmem>>, %arg13: memref<32x128xbf16, #tpu.memory_space<vmem>>, %arg14: memref<1x128xf32, #tpu.memory_space<vmem>>, %arg15: memref<5x8x128xf32, #tpu.memory_space<vmem>>, %arg16: memref<64x128xf32, #tpu.memory_space<vmem>>, %arg17: memref<8x8x32xf32, #tpu.memory_space<vmem>>, %arg18: memref<8x8x32xf32, #tpu.memory_space<vmem>>) attributes {dimension_semantics = [], scalar_prefetch = 0 : i64, scratch_operands = 3 : i64, tpu.core_type = #tpu.core_type<tc>} {
    %c0 = arith.constant 0 : index
    %c0_0 = arith.constant 0 : index
    %0 = vector.load %arg9[%c0, %c0_0] : memref<1x128xf32, #tpu.memory_space<vmem>>, vector<1x128xf32>
    %1 = vector.shape_cast %0 : vector<1x128xf32> to vector<1x128xf32>
    %2 = vector.broadcast %1 : vector<1x128xf32> to vector<8x128xf32>
    %c0_1 = arith.constant 0 : index
    %c0_2 = arith.constant 0 : index
    %3 = vector.load %arg12[%c0_1, %c0_2] : memref<1x32xf32, #tpu.memory_space<vmem>>, vector<1x32xf32>
    %4 = vector.shape_cast %3 : vector<1x32xf32> to vector<1x32xf32>
    %5 = vector.broadcast %4 : vector<1x32xf32> to vector<8x32xf32>
    %c0_3 = arith.constant 0 : index
    %c0_4 = arith.constant 0 : index
    %6 = vector.load %arg14[%c0_3, %c0_4] : memref<1x128xf32, #tpu.memory_space<vmem>>, vector<1x128xf32>
    %7 = vector.shape_cast %6 : vector<1x128xf32> to vector<1x128xf32>
    %8 = vector.broadcast %7 : vector<1x128xf32> to vector<8x128xf32>
    %c0_5 = arith.constant 0 : index
    %c0_6 = arith.constant 0 : index
    %9 = vector.load %arg0[%c0_5, %c0_6] : memref<64x128xbf16, #tpu.memory_space<vmem>>, vector<64x128xbf16>
    %c0_7 = arith.constant 0 : index
    %c0_8 = arith.constant 0 : index
    %10 = vector.load %arg4[%c0_7, %c0_8] : memref<128x128xbf16, #tpu.memory_space<vmem>>, vector<128x128xbf16>
    %cst = arith.constant dense<0.000000e+00> : vector<64x128xf32>
    %11 = tpu.matmul %9, %10, %cst {dimension_numbers = #tpu.dot_dimension_numbers<[1], [0], [0], [1], [0, 0, 1, 1], [], []>} : vector<64x128xbf16>, vector<128x128xbf16>, vector<64x128xf32> -> vector<64x128xf32>
    %c0_9 = arith.constant 0 : index
    %c0_10 = arith.constant 0 : index
    %12 = vector.load %arg6[%c0_9, %c0_10] : memref<1x128xf32, #tpu.memory_space<vmem>>, vector<1x128xf32>
    %13 = vector.broadcast %12 : vector<1x128xf32> to vector<64x128xf32>
    %14 = arith.addf %11, %13 : vector<64x128xf32>
    %c0_11 = arith.constant 0 : index
    %c0_12 = arith.constant 0 : index
    %15 = vector.load %arg16[%c0_11, %c0_12] : memref<64x128xf32, #tpu.memory_space<vmem>>, vector<64x128xf32>
    tpu.vector_store %arg16[%c0_11, %c0_12], %14 {strides = array<i32>} : memref<64x128xf32, #tpu.memory_space<vmem>>, vector<64x128xf32>,
    %cst_13 = arith.constant 0.000000e+00 : f32
    %16 = vector.broadcast %cst_13 : f32 to vector<8x32xf32>
    %c0_i32 = arith.constant 0 : i32
    %c8_i32 = arith.constant 8 : i32
    %17 = arith.addi %c0_i32, %c8_i32 : i32
    %c1_i32 = arith.constant 1 : i32
    %18:2 = scf.for %arg19 = %c0_i32 to %17 step %c1_i32 iter_args(%arg20 = %16, %arg21 = %16) -> (vector<8x32xf32>, vector<8x32xf32>)  : i32 {
      %c8_i32_61 = arith.constant 8 : i32
      %62 = arith.muli %arg19, %c8_i32_61 : i32
      %63 = tpu.assume_multiple %62, 8 : i32
      %64 = arith.index_cast %63 : i32 to index
      %c0_62 = arith.constant 0 : index
      %65 = vector.load %arg16[%64, %c0_62] : memref<64x128xf32, #tpu.memory_space<vmem>>, vector<8x128xf32>
      %66 = arith.truncf %arg20 : vector<8x32xf32> to vector<8x32xbf16>
      %c0_63 = arith.constant 0 : index
      %c0_64 = arith.constant 0 : index
      %67 = vector.load %arg5[%c0_63, %c0_64] : memref<32x128xbf16, #tpu.memory_space<vmem>>, vector<32x128xbf16>
      %cst_65 = arith.constant dense<0.000000e+00> : vector<8x128xf32>
      %68 = tpu.matmul %66, %67, %cst_65 {dimension_numbers = #tpu.dot_dimension_numbers<[1], [0], [0], [1], [0, 0, 1, 1], [], []>} : vector<8x32xbf16>, vector<32x128xbf16>, vector<8x128xf32> -> vector<8x128xf32>
      %69 = arith.addf %65, %68 : vector<8x128xf32>
      %70 = vector.extract_strided_slice %69 {offsets = [0, 0], sizes = [8, 32], strides = [1, 1]} : vector<8x128xf32> to vector<8x32xf32>
      %71 = arith.negf %70 : vector<8x32xf32>
      %72 = math.exp %71 : vector<8x32xf32>
      %cst_66 = arith.constant 1.000000e+00 : f32
      %73 = vector.broadcast %cst_66 : f32 to vector<8x32xf32>
      %74 = arith.addf %73, %72 : vector<8x32xf32>
      %75 = arith.divf %73, %74 : vector<8x32xf32>
      %76 = vector.extract_strided_slice %69 {offsets = [0, 32], sizes = [8, 32], strides = [1, 1]} : vector<8x128xf32> to vector<8x32xf32>
      %77 = arith.negf %76 : vector<8x32xf32>
      %78 = math.exp %77 : vector<8x32xf32>
      %cst_67 = arith.constant 1.000000e+00 : f32
      %79 = vector.broadcast %cst_67 : f32 to vector<8x32xf32>
      %80 = arith.addf %79, %78 : vector<8x32xf32>
      %81 = arith.divf %79, %80 : vector<8x32xf32>
      %82 = vector.extract_strided_slice %69 {offsets = [0, 64], sizes = [8, 32], strides = [1, 1]} : vector<8x128xf32> to vector<8x32xf32>
      %83 = math.tanh %82 : vector<8x32xf32>
      %84 = vector.extract_strided_slice %69 {offsets = [0, 96], sizes = [8, 32], strides = [1, 1]} : vector<8x128xf32> to vector<8x32xf32>
      %85 = arith.negf %84 : vector<8x32xf32>
      %86 = math.exp %85 : vector<8x32xf32>
      %cst_68 = arith.constant 1.000000e+00 : f32
      %87 = vector.broadcast %cst_68 : f32 to vector<8x32xf32>
      %88 = arith.addf %87, %86 : vector<8x32xf32>
      %89 = arith.divf %87, %88 : vector<8x32xf32>
      %90 = arith.mulf %81, %arg21 : vector<8x32xf32>
      %91 = arith.mulf %75, %83 : vector<8x32xf32>
      %92 = arith.addf %90, %91 : vector<8x32xf32>
      %93 = math.tanh %92 : vector<8x32xf32>
      %94 = arith.mulf %89, %93 : vector<8x32xf32>
      %95 = arith.index_cast %arg19 : i32 to index
      %c0_69 = arith.constant 0 : index
      %c0_70 = arith.constant 0 : index
      %96 = vector.load %arg1[%95, %c0_69, %c0_70] : memref<8x8x1xf32, #tpu.memory_space<vmem>>, vector<1x8x1xf32>
      %97 = vector.shape_cast %96 : vector<1x8x1xf32> to vector<8x1xf32>
      %98 = vector.broadcast %97 : vector<8x1xf32> to vector<8x32xf32>
      %99 = arith.mulf %98, %94 : vector<8x32xf32>
      %cst_71 = arith.constant 1.000000e+00 : f32
      %100 = vector.broadcast %cst_71 : f32 to vector<8x1xf32>
      %101 = arith.subf %100, %97 : vector<8x1xf32>
      %102 = vector.broadcast %101 : vector<8x1xf32> to vector<8x32xf32>
      %103 = arith.mulf %102, %arg20 : vector<8x32xf32>
      %104 = arith.addf %99, %103 : vector<8x32xf32>
      %105 = vector.broadcast %97 : vector<8x1xf32> to vector<8x32xf32>
      %106 = arith.mulf %105, %92 : vector<8x32xf32>
      %cst_72 = arith.constant 1.000000e+00 : f32
      %107 = vector.broadcast %cst_72 : f32 to vector<8x1xf32>
      %108 = arith.subf %107, %97 : vector<8x1xf32>
      %109 = vector.broadcast %108 : vector<8x1xf32> to vector<8x32xf32>
      %110 = arith.mulf %109, %arg21 : vector<8x32xf32>
      %111 = arith.addf %106, %110 : vector<8x32xf32>
      %112 = vector.broadcast %97 : vector<8x1xf32> to vector<8x32xf32>
      %113 = arith.mulf %112, %94 : vector<8x32xf32>
      %114 = arith.index_cast %arg19 : i32 to index
      %c0_73 = arith.constant 0 : index
      %c0_74 = arith.constant 0 : index
      %115 = vector.load %arg17[%114, %c0_73, %c0_74] : memref<8x8x32xf32, #tpu.memory_space<vmem>>, vector<1x8x32xf32>
      %116 = vector.shape_cast %115 : vector<1x8x32xf32> to vector<8x32xf32>
      %117 = vector.shape_cast %113 : vector<8x32xf32> to vector<1x8x32xf32>
      tpu.vector_store %arg17[%114, %c0_73, %c0_74], %117 {strides = array<i32>} : memref<8x8x32xf32, #tpu.memory_space<vmem>>, vector<1x8x32xf32>,
      scf.yield %104, %111 : vector<8x32xf32>, vector<8x32xf32>
    }
    %c8_i32_14 = arith.constant 8 : i32
    %c0_15 = arith.constant 0 : index
    %c0_16 = arith.constant 0 : index
    %c0_17 = arith.constant 0 : index
    %19 = vector.load %arg17[%c0_15, %c0_16, %c0_17] : memref<8x8x32xf32, #tpu.memory_space<vmem>>, vector<1x8x32xf32>
    %20 = vector.shape_cast %19 : vector<1x8x32xf32> to vector<8x32xf32>
    %c0_18 = arith.constant 0 : index
    %c0_19 = arith.constant 0 : index
    %c0_20 = arith.constant 0 : index
    %21 = vector.load %arg18[%c0_18, %c0_19, %c0_20] : memref<8x8x32xf32, #tpu.memory_space<vmem>>, vector<8x1x32xf32>
    %22 = vector.shape_cast %21 : vector<8x1x32xf32> to vector<8x32xf32>
    %23 = vector.shape_cast %20 : vector<8x32xf32> to vector<8x1x32xf32>
    tpu.vector_store %arg18[%c0_18, %c0_19, %c0_20], %23 {strides = array<i32>} : memref<8x8x32xf32, #tpu.memory_space<vmem>>, vector<8x1x32xf32>,
    %c1 = arith.constant 1 : index
    %c0_21 = arith.constant 0 : index
    %c0_22 = arith.constant 0 : index
    %24 = vector.load %arg17[%c1, %c0_21, %c0_22] : memref<8x8x32xf32, #tpu.memory_space<vmem>>, vector<1x8x32xf32>
    %25 = vector.shape_cast %24 : vector<1x8x32xf32> to vector<8x32xf32>
    %c0_23 = arith.constant 0 : index
    %c1_24 = arith.constant 1 : index
    %c0_25 = arith.constant 0 : index
    %26 = vector.load %arg18[%c0_23, %c1_24, %c0_25] : memref<8x8x32xf32, #tpu.memory_space<vmem>>, vector<8x1x32xf32>
    %27 = vector.shape_cast %26 : vector<8x1x32xf32> to vector<8x32xf32>
    %28 = vector.shape_cast %25 : vector<8x32xf32> to vector<8x1x32xf32>
    tpu.vector_store %arg18[%c0_23, %c1_24, %c0_25], %28 {strides = array<i32>} : memref<8x8x32xf32, #tpu.memory_space<vmem>>, vector<8x1x32xf32>,
    %c2 = arith.constant 2 : index
    %c0_26 = arith.constant 0 : index
    %c0_27 = arith.constant 0 : index
    %29 = vector.load %arg17[%c2, %c0_26, %c0_27] : memref<8x8x32xf32, #tpu.memory_space<vmem>>, vector<1x8x32xf32>
    %30 = vector.shape_cast %29 : vector<1x8x32xf32> to vector<8x32xf32>
    %c0_28 = arith.constant 0 : index
    %c2_29 = arith.constant 2 : index
    %c0_30 = arith.constant 0 : index
    %31 = vector.load %arg18[%c0_28, %c2_29, %c0_30] : memref<8x8x32xf32, #tpu.memory_space<vmem>>, vector<8x1x32xf32>
    %32 = vector.shape_cast %31 : vector<8x1x32xf32> to vector<8x32xf32>
    %33 = vector.shape_cast %30 : vector<8x32xf32> to vector<8x1x32xf32>
    tpu.vector_store %arg18[%c0_28, %c2_29, %c0_30], %33 {strides = array<i32>} : memref<8x8x32xf32, #tpu.memory_space<vmem>>, vector<8x1x32xf32>,
    %c3 = arith.constant 3 : index
    %c0_31 = arith.constant 0 : index
    %c0_32 = arith.constant 0 : index
    %34 = vector.load %arg17[%c3, %c0_31, %c0_32] : memref<8x8x32xf32, #tpu.memory_space<vmem>>, vector<1x8x32xf32>
    %35 = vector.shape_cast %34 : vector<1x8x32xf32> to vector<8x32xf32>
    %c0_33 = arith.constant 0 : index
    %c3_34 = arith.constant 3 : index
    %c0_35 = arith.constant 0 : index
    %36 = vector.load %arg18[%c0_33, %c3_34, %c0_35] : memref<8x8x32xf32, #tpu.memory_space<vmem>>, vector<8x1x32xf32>
    %37 = vector.shape_cast %36 : vector<8x1x32xf32> to vector<8x32xf32>
    %38 = vector.shape_cast %35 : vector<8x32xf32> to vector<8x1x32xf32>
    tpu.vector_store %arg18[%c0_33, %c3_34, %c0_35], %38 {strides = array<i32>} : memref<8x8x32xf32, #tpu.memory_space<vmem>>, vector<8x1x32xf32>,
    %c4 = arith.constant 4 : index
    %c0_36 = arith.constant 0 : index
    %c0_37 = arith.constant 0 : index
    %39 = vector.load %arg17[%c4, %c0_36, %c0_37] : memref<8x8x32xf32, #tpu.memory_space<vmem>>, vector<1x8x32xf32>
    %40 = vector.shape_cast %39 : vector<1x8x32xf32> to vector<8x32xf32>
    %c0_38 = arith.constant 0 : index
    %c4_39 = arith.constant 4 : index
    %c0_40 = arith.constant 0 : index
    %41 = vector.load %arg18[%c0_38, %c4_39, %c0_40] : memref<8x8x32xf32, #tpu.memory_space<vmem>>, vector<8x1x32xf32>
    %42 = vector.shape_cast %41 : vector<8x1x32xf32> to vector<8x32xf32>
    %43 = vector.shape_cast %40 : vector<8x32xf32> to vector<8x1x32xf32>
    tpu.vector_store %arg18[%c0_38, %c4_39, %c0_40], %43 {strides = array<i32>} : memref<8x8x32xf32, #tpu.memory_space<vmem>>, vector<8x1x32xf32>,
    %c5 = arith.constant 5 : index
    %c0_41 = arith.constant 0 : index
    %c0_42 = arith.constant 0 : index
    %44 = vector.load %arg17[%c5, %c0_41, %c0_42] : memref<8x8x32xf32, #tpu.memory_space<vmem>>, vector<1x8x32xf32>
    %45 = vector.shape_cast %44 : vector<1x8x32xf32> to vector<8x32xf32>
    %c0_43 = arith.constant 0 : index
    %c5_44 = arith.constant 5 : index
    %c0_45 = arith.constant 0 : index
    %46 = vector.load %arg18[%c0_43, %c5_44, %c0_45] : memref<8x8x32xf32, #tpu.memory_space<vmem>>, vector<8x1x32xf32>
    %47 = vector.shape_cast %46 : vector<8x1x32xf32> to vector<8x32xf32>
    %48 = vector.shape_cast %45 : vector<8x32xf32> to vector<8x1x32xf32>
    tpu.vector_store %arg18[%c0_43, %c5_44, %c0_45], %48 {strides = array<i32>} : memref<8x8x32xf32, #tpu.memory_space<vmem>>, vector<8x1x32xf32>,
    %c6 = arith.constant 6 : index
    %c0_46 = arith.constant 0 : index
    %c0_47 = arith.constant 0 : index
    %49 = vector.load %arg17[%c6, %c0_46, %c0_47] : memref<8x8x32xf32, #tpu.memory_space<vmem>>, vector<1x8x32xf32>
    %50 = vector.shape_cast %49 : vector<1x8x32xf32> to vector<8x32xf32>
    %c0_48 = arith.constant 0 : index
    %c6_49 = arith.constant 6 : index
    %c0_50 = arith.constant 0 : index
    %51 = vector.load %arg18[%c0_48, %c6_49, %c0_50] : memref<8x8x32xf32, #tpu.memory_space<vmem>>, vector<8x1x32xf32>
    %52 = vector.shape_cast %51 : vector<8x1x32xf32> to vector<8x32xf32>
    %53 = vector.shape_cast %50 : vector<8x32xf32> to vector<8x1x32xf32>
    tpu.vector_store %arg18[%c0_48, %c6_49, %c0_50], %53 {strides = array<i32>} : memref<8x8x32xf32, #tpu.memory_space<vmem>>, vector<8x1x32xf32>,
    %c7 = arith.constant 7 : index
    %c0_51 = arith.constant 0 : index
    %c0_52 = arith.constant 0 : index
    %54 = vector.load %arg17[%c7, %c0_51, %c0_52] : memref<8x8x32xf32, #tpu.memory_space<vmem>>, vector<1x8x32xf32>
    %55 = vector.shape_cast %54 : vector<1x8x32xf32> to vector<8x32xf32>
    %c0_53 = arith.constant 0 : index
    %c7_54 = arith.constant 7 : index
    %c0_55 = arith.constant 0 : index
    %56 = vector.load %arg18[%c0_53, %c7_54, %c0_55] : memref<8x8x32xf32, #tpu.memory_space<vmem>>, vector<8x1x32xf32>
    %57 = vector.shape_cast %56 : vector<8x1x32xf32> to vector<8x32xf32>
    %58 = vector.shape_cast %55 : vector<8x32xf32> to vector<8x1x32xf32>
    tpu.vector_store %arg18[%c0_53, %c7_54, %c0_55], %58 {strides = array<i32>} : memref<8x8x32xf32, #tpu.memory_space<vmem>>, vector<8x1x32xf32>,
    %c0_56 = arith.constant 0 : index
    %c0_57 = arith.constant 0 : index
    %59 = vector.load %arg3[%c0_56, %c0_57] : memref<8x128xbf16, #tpu.memory_space<vmem>>, vector<8x128xbf16>
    %c0_i32_58 = arith.constant 0 : i32
    %c5_i32 = arith.constant 5 : i32
    %60 = arith.addi %c0_i32_58, %c5_i32 : i32
    %c1_i32_59 = arith.constant 1 : i32
    %61:3 = scf.for %arg19 = %c0_i32_58 to %60 step %c1_i32_59 iter_args(%arg20 = %18#0, %arg21 = %18#1, %arg22 = %59) -> (vector<8x32xf32>, vector<8x32xf32>, vector<8x128xbf16>)  : i32 {
      %c0_61 = arith.constant 0 : index
      %c0_62 = arith.constant 0 : index
      %62 = vector.load %arg7[%c0_61, %c0_62] : memref<128x128xbf16, #tpu.memory_space<vmem>>, vector<128x128xbf16>
      %cst_63 = arith.constant dense<0.000000e+00> : vector<8x128xf32>
      %63 = tpu.matmul %arg22, %62, %cst_63 {dimension_numbers = #tpu.dot_dimension_numbers<[1], [0], [0], [1], [0, 0, 1, 1], [], []>} : vector<8x128xbf16>, vector<128x128xbf16>, vector<8x128xf32> -> vector<8x128xf32>
      %64 = arith.addf %63, %2 : vector<8x128xf32>
      %65 = arith.truncf %arg20 : vector<8x32xf32> to vector<8x32xbf16>
      %c0_64 = arith.constant 0 : index
      %c0_65 = arith.constant 0 : index
      %66 = vector.load %arg8[%c0_64, %c0_65] : memref<32x128xbf16, #tpu.memory_space<vmem>>, vector<32x128xbf16>
      %cst_66 = arith.constant dense<0.000000e+00> : vector<8x128xf32>
      %67 = tpu.matmul %65, %66, %cst_66 {dimension_numbers = #tpu.dot_dimension_numbers<[1], [0], [0], [1], [0, 0, 1, 1], [], []>} : vector<8x32xbf16>, vector<32x128xbf16>, vector<8x128xf32> -> vector<8x128xf32>
      %68 = arith.addf %64, %67 : vector<8x128xf32>
      %69 = vector.extract_strided_slice %68 {offsets = [0, 0], sizes = [8, 32], strides = [1, 1]} : vector<8x128xf32> to vector<8x32xf32>
      %70 = arith.negf %69 : vector<8x32xf32>
      %71 = math.exp %70 : vector<8x32xf32>
      %cst_67 = arith.constant 1.000000e+00 : f32
      %72 = vector.broadcast %cst_67 : f32 to vector<8x32xf32>
      %73 = arith.addf %72, %71 : vector<8x32xf32>
      %74 = arith.divf %72, %73 : vector<8x32xf32>
      %75 = vector.extract_strided_slice %68 {offsets = [0, 32], sizes = [8, 32], strides = [1, 1]} : vector<8x128xf32> to vector<8x32xf32>
      %76 = arith.negf %75 : vector<8x32xf32>
      %77 = math.exp %76 : vector<8x32xf32>
      %cst_68 = arith.constant 1.000000e+00 : f32
      %78 = vector.broadcast %cst_68 : f32 to vector<8x32xf32>
      %79 = arith.addf %78, %77 : vector<8x32xf32>
      %80 = arith.divf %78, %79 : vector<8x32xf32>
      %81 = vector.extract_strided_slice %68 {offsets = [0, 64], sizes = [8, 32], strides = [1, 1]} : vector<8x128xf32> to vector<8x32xf32>
      %82 = math.tanh %81 : vector<8x32xf32>
      %83 = vector.extract_strided_slice %68 {offsets = [0, 96], sizes = [8, 32], strides = [1, 1]} : vector<8x128xf32> to vector<8x32xf32>
      %84 = arith.negf %83 : vector<8x32xf32>
      %85 = math.exp %84 : vector<8x32xf32>
      %cst_69 = arith.constant 1.000000e+00 : f32
      %86 = vector.broadcast %cst_69 : f32 to vector<8x32xf32>
      %87 = arith.addf %86, %85 : vector<8x32xf32>
      %88 = arith.divf %86, %87 : vector<8x32xf32>
      %89 = arith.mulf %80, %arg21 : vector<8x32xf32>
      %90 = arith.mulf %74, %82 : vector<8x32xf32>
      %91 = arith.addf %89, %90 : vector<8x32xf32>
      %92 = math.tanh %91 : vector<8x32xf32>
      %93 = arith.mulf %88, %92 : vector<8x32xf32>
      %c0_70 = arith.constant 0 : index
      %c0_71 = arith.constant 0 : index
      %c0_72 = arith.constant 0 : index
      %94 = vector.load %arg18[%c0_70, %c0_71, %c0_72] : memref<8x8x32xf32, #tpu.memory_space<vmem>>, vector<8x8x32xf32>
      %95 = vector.shape_cast %93 : vector<8x32xf32> to vector<8x1x32xf32>
      %96 = vector.broadcast %95 : vector<8x1x32xf32> to vector<8x8x32xf32>
      %97 = arith.mulf %94, %96 : vector<8x8x32xf32>
      %cst_73 = arith.constant dense<0.000000e+00> : vector<8x8xf32>
      %98 = vector.multi_reduction <add>, %97, %cst_73 [2] : vector<8x8x32xf32> to vector<8x8xf32>
      %c0_74 = arith.constant 0 : index
      %c0_75 = arith.constant 0 : index
      %99 = vector.load %arg2[%c0_74, %c0_75] : memref<8x8xf32, #tpu.memory_space<vmem>>, vector<8x8xf32>
      %100 = arith.addf %98, %99 : vector<8x8xf32>
      %cst_76 = arith.constant dense<0xFF800000> : vector<8xf32>
      %101 = vector.multi_reduction <maximumf>, %100, %cst_76 [1] : vector<8x8xf32> to vector<8xf32>
      %102 = vector.shape_cast %101 : vector<8xf32> to vector<8x1xf32>
      %103 = vector.broadcast %102 : vector<8x1xf32> to vector<8x8xf32>
      %104 = arith.subf %100, %103 : vector<8x8xf32>
      %105 = math.exp %104 : vector<8x8xf32>
      %cst_77 = arith.constant dense<0.000000e+00> : vector<8xf32>
      %106 = vector.multi_reduction <add>, %105, %cst_77 [1] : vector<8x8xf32> to vector<8xf32>
      %107 = vector.shape_cast %106 : vector<8xf32> to vector<8x1xf32>
      %cst_78 = arith.constant 9.99999968E-21 : f32
      %108 = vector.broadcast %cst_78 : f32 to vector<8x1xf32>
      %109 = arith.maximumf %107, %108 : vector<8x1xf32>
      %110 = tpu.reciprocal %109 {approx = true} : vector<8x1xf32> -> vector<8x1xf32>
      %111 = vector.broadcast %110 : vector<8x1xf32> to vector<8x8xf32>
      %112 = arith.mulf %105, %111 : vector<8x8xf32>
      %113 = vector.shape_cast %112 : vector<8x8xf32> to vector<8x8x1xf32>
      %114 = vector.broadcast %113 : vector<8x8x1xf32> to vector<8x8x32xf32>
      %115 = arith.mulf %114, %94 : vector<8x8x32xf32>
      %cst_79 = arith.constant dense<0.000000e+00> : vector<8x32xf32>
      %116 = vector.multi_reduction <add>, %115, %cst_79 [1] : vector<8x8x32xf32> to vector<8x32xf32>
      %117 = arith.truncf %116 : vector<8x32xf32> to vector<8x32xbf16>
      %c0_80 = arith.constant 0 : index
      %c0_81 = arith.constant 0 : index
      %118 = vector.load %arg10[%c0_80, %c0_81] : memref<32x32xbf16, #tpu.memory_space<vmem>>, vector<32x32xbf16>
      %cst_82 = arith.constant dense<0.000000e+00> : vector<8x32xf32>
      %119 = tpu.matmul %117, %118, %cst_82 {dimension_numbers = #tpu.dot_dimension_numbers<[1], [0], [0], [1], [0, 0, 1, 1], [], []>} : vector<8x32xbf16>, vector<32x32xbf16>, vector<8x32xf32> -> vector<8x32xf32>
      %120 = arith.truncf %93 : vector<8x32xf32> to vector<8x32xbf16>
      %c0_83 = arith.constant 0 : index
      %c0_84 = arith.constant 0 : index
      %121 = vector.load %arg11[%c0_83, %c0_84] : memref<32x32xbf16, #tpu.memory_space<vmem>>, vector<32x32xbf16>
      %cst_85 = arith.constant dense<0.000000e+00> : vector<8x32xf32>
      %122 = tpu.matmul %120, %121, %cst_85 {dimension_numbers = #tpu.dot_dimension_numbers<[1], [0], [0], [1], [0, 0, 1, 1], [], []>} : vector<8x32xbf16>, vector<32x32xbf16>, vector<8x32xf32> -> vector<8x32xf32>
      %123 = arith.addf %119, %122 : vector<8x32xf32>
      %124 = arith.addf %123, %5 : vector<8x32xf32>
      %125 = math.tanh %124 : vector<8x32xf32>
      %126 = arith.truncf %125 : vector<8x32xf32> to vector<8x32xbf16>
      %c0_86 = arith.constant 0 : index
      %c0_87 = arith.constant 0 : index
      %127 = vector.load %arg13[%c0_86, %c0_87] : memref<32x128xbf16, #tpu.memory_space<vmem>>, vector<32x128xbf16>
      %cst_88 = arith.constant dense<0.000000e+00> : vector<8x128xf32>
      %128 = tpu.matmul %126, %127, %cst_88 {dimension_numbers = #tpu.dot_dimension_numbers<[1], [0], [0], [1], [0, 0, 1, 1], [], []>} : vector<8x32xbf16>, vector<32x128xbf16>, vector<8x128xf32> -> vector<8x128xf32>
      %129 = arith.addf %128, %8 : vector<8x128xf32>
      %130 = arith.index_cast %arg19 : i32 to index
      %c0_89 = arith.constant 0 : index
      %c0_90 = arith.constant 0 : index
      %131 = vector.load %arg15[%130, %c0_89, %c0_90] : memref<5x8x128xf32, #tpu.memory_space<vmem>>, vector<1x8x128xf32>
      %132 = vector.shape_cast %131 : vector<1x8x128xf32> to vector<8x128xf32>
      %133 = vector.shape_cast %129 : vector<8x128xf32> to vector<1x8x128xf32>
      tpu.vector_store %arg15[%130, %c0_89, %c0_90], %133 {strides = array<i32>} : memref<5x8x128xf32, #tpu.memory_space<vmem>>, vector<1x8x128xf32>,
      %cst_91 = arith.constant dense<0xFF800000> : vector<8xf32>
      %134 = vector.multi_reduction <maximumf>, %129, %cst_91 [1] : vector<8x128xf32> to vector<8xf32>
      %135 = vector.shape_cast %134 : vector<8xf32> to vector<8x1xf32>
      %136 = tpu.iota {dimensions = array<i32: 1>} : vector<8x128xi32>
      %137 = vector.broadcast %135 : vector<8x1xf32> to vector<8x128xf32>
      %138 = arith.cmpf oge, %129, %137 : vector<8x128xf32>
      %c128_i32 = arith.constant 128 : i32
      %139 = vector.broadcast %c128_i32 : i32 to vector<8x128xi32>
      %140 = arith.select %138, %136, %139 : vector<8x128xi1>, vector<8x128xi32>
      %cst_92 = arith.constant dense<2147483647> : vector<8xi32>
      %141 = vector.multi_reduction <minsi>, %140, %cst_92 [1] : vector<8x128xi32> to vector<8xi32>
      %142 = vector.shape_cast %141 : vector<8xi32> to vector<8x1xi32>
      %143 = vector.broadcast %142 : vector<8x1xi32> to vector<8x128xi32>
      %144 = arith.cmpi eq, %136, %143 : vector<8x128xi32>
      %145 = arith.extui %144 : vector<8x128xi1> to vector<8x128xi32>
      %146 = arith.sitofp %145 : vector<8x128xi32> to vector<8x128xf32>
      %147 = arith.truncf %146 : vector<8x128xf32> to vector<8x128xbf16>
      scf.yield %93, %91, %147 : vector<8x32xf32>, vector<8x32xf32>, vector<8x128xbf16>
    }
    %c5_i32_60 = arith.constant 5 : i32
    return
  }
}

</mosaic_0001>

<llo_original>
// kernel: eq.1
$region0: #{eq.1}
  %s0 = inlined_call_operand.vmem [shape: s32[8,8], index: 0, kind: input, shape index: {}]
  %s1 = inlined_call_operand.vmem [shape: s32[64], index: 1, kind: output, shape index: {}]
  $region1: #{eq.1} parent=0
    #allocation0 [shape = 'u8[4096]{0}', space=vmem, size = 0x1000, scoped, tag = 'scoped mem for output reshape']
    %v2 = vld [vmem:[%s0] sm:$0x1]
    %vm3 = vcmask 64512
    %4 = vst.msk [vmem:[#allocation0] sm:$0x1] %vm3, %v2
    %s5 = scalar_lea.vmem %s0, 7
    %v6 = vld [vmem:[%s5] sm:$0x1]
    %7 = vrot.lane.b32.xlu0 %v6, 56
    %v8 = vpop.permute.xlu0 %7
    %vm9 = vcmask 523712
    %10 = vst.msk [vmem:[#allocation0] sm:$0x1] %vm9, %v8
    %s11 = scalar_lea.vmem %s0, 6
    %v12 = vld [vmem:[%s11] sm:$0x1]
    %13 = vrot.lane.b32.xlu0 %v12, 48
    %v14 = vpop.permute.xlu0 %13
    %vm15 = vcmask 458112
    %16 = vst.msk [vmem:[#allocation0] sm:$0x1] %vm15, %v14
    %s17 = scalar_lea.vmem %s0, 5
    %v18 = vld [vmem:[%s17] sm:$0x1]
    %19 = vrot.lane.b32.xlu0 %v18, 40
    %v20 = vpop.permute.xlu0 %19
    %vm21 = vcmask 392512
    %22 = vst.msk [vmem:[#allocation0] sm:$0x1] %vm21, %v20
    %s23 = scalar_lea.vmem %s0, 4
    %v24 = vld [vmem:[%s23] sm:$0x1]
    %25 = vrot.lane.b32.xlu0 %v24, 32
    %v26 = vpop.permute.xlu0 %25
    %vm27 = vcmask 326912
    %28 = vst.msk [vmem:[#allocation0] sm:$0x1] %vm27, %v26
    %s29 = scalar_lea.vmem %s0, 3
    %v30 = vld [vmem:[%s29] sm:$0x1]
    %31 = vrot.lane.b32.xlu0 %v30, 24
    %v32 = vpop.permute.xlu0 %31
    %vm33 = vcmask 261312
    %34 = vst.msk [vmem:[#allocation0] sm:$0x1] %vm33, %v32
    %s35 = scalar_lea.vmem %s0, 2
    %v36 = vld [vmem:[%s35] sm:$0x1]
    %37 = vrot.lane.b32.xlu0 %v36, 16
    %v38 = vpop.permute.xlu0 %37
    %vm39 = vcmask 195712
    %40 = vst.msk [vmem:[#allocation0] sm:$0x1] %vm39, %v38
    %s41 = scalar_lea.vmem %s0, 1
    %v42 = vld [vmem:[%s41] sm:$0x1]
    %43 = vrot.lane.b32.xlu0 %v42, 8
    %v44 = vpop.permute.xlu0 %43
    %vm45 = vcmask 130112
    %46 = vst.msk [vmem:[#allocation0] sm:$0x1] %vm45, %v44
    %s48 = sshllo.u32 0, 1
    %v50 = vld [vmem:[#allocation0] sm:%s48]
    %s51 = sshllo.u32 0, 1
    %52 = vst [vmem:[%s1] sm:%s51] %v50

// kernel: seq2seq_forward.1
$region0: #{seq2seq_forward.1}
  #allocation0 [shape = 'u32[]', space=smem, size = 0x4, offset = 0x4, fixed_abs, tag = 'smem constant byte address 0x4 - core index']
  #allocation1 [shape = 'u32[144,128]{1,0:T(1,128)}', space=vmem, size = 0x12000, scoped, tag = 'internal scratch']
  #allocation2 [shape = 'f32[64,128]{1,0:T(8,128)}', space=vmem, size = 0x8000, scoped, tag = 'scratch operand']
  #allocation3 [shape = 'f32[8,8,32]{2,1,0:T(8,128)}', space=vmem, size = 0x8000, scoped, tag = 'scratch operand']
  #allocation4 [shape = 'f32[8,8,32]{2,1,0:T(8,128)}', space=vmem, size = 0x8000, scoped, tag = 'scratch operand']
  %s0 = inlined_call_operand.vmem [shape: bf16[64,128], index: 0, kind: input, shape index: {}]
  %s1 = inlined_call_operand.vmem [shape: f32[8,8,1], index: 1, kind: input, shape index: {}]
  %s2 = inlined_call_operand.vmem [shape: f32[8,8], index: 2, kind: input, shape index: {}]
  %s3 = inlined_call_operand.vmem [shape: bf16[8,128], index: 3, kind: input, shape index: {}]
  %s4 = inlined_call_operand.vmem [shape: bf16[128,128], index: 4, kind: input, shape index: {}]
  %s5 = inlined_call_operand.vmem [shape: bf16[32,128], index: 5, kind: input, shape index: {}]
  %s6 = inlined_call_operand.vmem [shape: f32[1,128], index: 6, kind: input, shape index: {}]
  %s7 = inlined_call_operand.vmem [shape: bf16[128,128], index: 7, kind: input, shape index: {}]
  %s8 = inlined_call_operand.vmem [shape: bf16[32,128], index: 8, kind: input, shape index: {}]
  %s9 = inlined_call_operand.vmem [shape: f32[1,128], index: 9, kind: input, shape index: {}]
  %s10 = inlined_call_operand.vmem [shape: bf16[32,32], index: 10, kind: input, shape index: {}]
  %s11 = inlined_call_operand.vmem [shape: bf16[32,32], index: 11, kind: input, shape index: {}]
  %s12 = inlined_call_operand.vmem [shape: f32[1,32], index: 12, kind: input, shape index: {}]
  %s13 = inlined_call_operand.vmem [shape: bf16[32,128], index: 13, kind: input, shape index: {}]
  %s14 = inlined_call_operand.vmem [shape: f32[1,128], index: 14, kind: input, shape index: {}]
  %s15 = inlined_call_operand.vmem [shape: f32[5,8,128], index: 15, kind: output, shape index: {}]
  %s16 = sld [smem:[#allocation0]]
  $region84: #{seq2seq_forward.1} parent=0
    _
  %s18 = ssub.s32 1, %s16
  %s19 = scalar_select 0, %s18, %s16
  // Predicated region
  $region2: #{seq2seq_forward.1} parent=0 // pred_check
    _
  $region3: #{seq2seq_forward.1} parent=0 // pred_check_branch
    %21 = sbr.rel (0) target = $region5
  $region4: #{seq2seq_forward.1} parent=0 // pred_region
    _
  $region5: #{seq2seq_forward.1} parent=0 // pred_fallthru
    _
  // Predicated region
  $region6: #{seq2seq_forward.1} parent=0 // pred_check
    _
  $region7: #{seq2seq_forward.1} parent=0 // pred_check_branch
    %23 = sbr.rel (0) target = $region9
  $region8: #{seq2seq_forward.1} parent=0 // pred_region
    _
  $region9: #{seq2seq_forward.1} parent=0 // pred_fallthru
    _
  // Predicated region
  $region10: #{seq2seq_forward.1} parent=0 // pred_check
    _
  $region11: #{seq2seq_forward.1} parent=0 // pred_check_branch
    %25 = sbr.rel (0) target = $region13
  $region12: #{seq2seq_forward.1} parent=0 // pred_region
    _
  $region13: #{seq2seq_forward.1} parent=0 // pred_fallthru
    _
  // Predicated region
  $region14: #{seq2seq_forward.1} parent=0 // pred_check
    _
  $region15: #{seq2seq_forward.1} parent=0 // pred_check_branch
    %27 = sbr.rel (0) target = $region17
  $region16: #{seq2seq_forward.1} parent=0 // pred_region
    _
  $region17: #{seq2seq_forward.1} parent=0 // pred_fallthru
    _
  // Predicated region
  $region18: #{seq2seq_forward.1} parent=0 // pred_check
    _
  $region19: #{seq2seq_forward.1} parent=0 // pred_check_branch
    %29 = sbr.rel (0) target = $region21
  $region20: #{seq2seq_forward.1} parent=0 // pred_region
    _
  $region21: #{seq2seq_forward.1} parent=0 // pred_fallthru
    _
  // Predicated region
  $region22: #{seq2seq_forward.1} parent=0 // pred_check
    _
  $region23: #{seq2seq_forward.1} parent=0 // pred_check_branch
    %31 = sbr.rel (0) target = $region25
  $region24: #{seq2seq_forward.1} parent=0 // pred_region
    _
  $region25: #{seq2seq_forward.1} parent=0 // pred_fallthru
    _
  // Predicated region
  $region26: #{seq2seq_forward.1} parent=0 // pred_check
    _
  $region27: #{seq2seq_forward.1} parent=0 // pred_check_branch
    %33 = sbr.rel (0) target = $region29
  $region28: #{seq2seq_forward.1} parent=0 // pred_region
    _
  $region29: #{seq2seq_forward.1} parent=0 // pred_fallthru
    _
  // Predicated region
  $region30: #{seq2seq_forward.1} parent=0 // pred_check
    _
  $region31: #{seq2seq_forward.1} parent=0 // pred_check_branch
    %35 = sbr.rel (0) target = $region33
  $region32: #{seq2seq_forward.1} parent=0 // pred_region
    _
  $region33: #{seq2seq_forward.1} parent=0 // pred_fallthru
    _
  // Predicated region
  $region34: #{seq2seq_forward.1} parent=0 // pred_check
    _
  $region35: #{seq2seq_forward.1} parent=0 // pred_check_branch
    %37 = sbr.rel (0) target = $region37
  $region36: #{seq2seq_forward.1} parent=0 // pred_region
    _
  $region37: #{seq2seq_forward.1} parent=0 // pred_fallthru
    _
  // Predicated region
  $region38: #{seq2seq_forward.1} parent=0 // pred_check
    _
  $region39: #{seq2seq_forward.1} parent=0 // pred_check_branch
    %39 = sbr.rel (0) target = $region41
  $region40: #{seq2seq_forward.1} parent=0 // pred_region
    _
  $region41: #{seq2seq_forward.1} parent=0 // pred_fallthru
    _
  // Predicated region
  $region42: #{seq2seq_forward.1} parent=0 // pred_check
    _
  $region43: #{seq2seq_forward.1} parent=0 // pred_check_branch
    %41 = sbr.rel (0) target = $region45
  $region44: #{seq2seq_forward.1} parent=0 // pred_region
    _
  $region45: #{seq2seq_forward.1} parent=0 // pred_fallthru
    _
  // Predicated region
  $region46: #{seq2seq_forward.1} parent=0 // pred_check
    _
  $region47: #{seq2seq_forward.1} parent=0 // pred_check_branch
    %43 = sbr.rel (0) target = $region49
  $region48: #{seq2seq_forward.1} parent=0 // pred_region
    _
  $region49: #{seq2seq_forward.1} parent=0 // pred_fallthru
    _
  // Predicated region
  $region50: #{seq2seq_forward.1} parent=0 // pred_check
    _
  $region51: #{seq2seq_forward.1} parent=0 // pred_check_branch
    %45 = sbr.rel (0) target = $region53
  $region52: #{seq2seq_forward.1} parent=0 // pred_region
    _
  $region53: #{seq2seq_forward.1} parent=0 // pred_fallthru
    _
  // Predicated region
  $region54: #{seq2seq_forward.1} parent=0 // pred_check
    _
  $region55: #{seq2seq_forward.1} parent=0 // pred_check_branch
    %47 = sbr.rel (0) target = $region57
  $region56: #{seq2seq_forward.1} parent=0 // pred_region
    _
  $region57: #{seq2seq_forward.1} parent=0 // pred_fallthru
    _
  // Predicated region
  $region58: #{seq2seq_forward.1} parent=0 // pred_check
    _
  $region59: #{seq2seq_forward.1} parent=0 // pred_check_branch
    %49 = sbr.rel (0) target = $region61
  $region60: #{seq2seq_forward.1} parent=0 // pred_region
    _
  $region61: #{seq2seq_forward.1} parent=0 // pred_fallthru
    _
  %v51 = vld [vmem:[%s9] sm:$0x1]
  %v53 = vlaneseq
  %v54 = vshrl.u32 %v53, 7
  %v55 = vsub.s32 0, %v54
  %v56 = vrot.slane %v51, %v55
  %v58 = vld [vmem:[%s12] sm:$0x1]
  %v60 = vlaneseq
  %v61 = vshrl.u32 %v60, 7
  %v62 = vsub.s32 0, %v61
  %v63 = vrot.slane %v58, %v62
  %v65 = vld [vmem:[%s14] sm:$0x1]
  %v67 = vlaneseq
  %v68 = vshrl.u32 %v67, 7
  %v69 = vsub.s32 0, %v68
  %v70 = vrot.slane %v65, %v69
  %v72 = vld [vmem:[%s0] sm:$0xf]
  %v73 = vld [vmem:[%s0 + $0x4] sm:$0xf]
  %v74 = vld [vmem:[%s0 + $0x8] sm:$0xf]
  %v75 = vld [vmem:[%s0 + $0xc] sm:$0xf]
  %v76 = vld [vmem:[%s0 + $0x10] sm:$0xf]
  %v77 = vld [vmem:[%s0 + $0x14] sm:$0xf]
  %v78 = vld [vmem:[%s0 + $0x18] sm:$0xf]
  %v79 = vld [vmem:[%s0 + $0x1c] sm:$0xf]
  %v80 = vld [vmem:[%s4] sm:$0xf]
  %v81 = vld [vmem:[%s4 + $0x4] sm:$0xf]
  %v82 = vld [vmem:[%s4 + $0x8] sm:$0xf]
  %v83 = vld [vmem:[%s4 + $0xc] sm:$0xf]
  %v84 = vld [vmem:[%s4 + $0x10] sm:$0xf]
  %v85 = vld [vmem:[%s4 + $0x14] sm:$0xf]
  %v86 = vld [vmem:[%s4 + $0x18] sm:$0xf]
  %v87 = vld [vmem:[%s4 + $0x1c] sm:$0xf]
  %v88 = vld [vmem:[%s4 + $0x20] sm:$0xf]
  %v89 = vld [vmem:[%s4 + $0x24] sm:$0xf]
  %v90 = vld [vmem:[%s4 + $0x28] sm:$0xf]
  %v91 = vld [vmem:[%s4 + $0x2c] sm:$0xf]
  %v92 = vld [vmem:[%s4 + $0x30] sm:$0xf]
  %v93 = vld [vmem:[%s4 + $0x34] sm:$0xf]
  %v94 = vld [vmem:[%s4 + $0x38] sm:$0xf]
  %v95 = vld [vmem:[%s4 + $0x3c] sm:$0xf]
  %v96 = vld [vmem:[%s6] sm:$0x1]
  %v98 = vlaneseq
  %v99 = vshrl.u32 %v98, 7
  %v100 = vsub.s32 0, %v99
  %v101 = vrot.slane %v96, %v100
  %v111 = vunpack.c.l.b16 %v72
  %v112 = vunpack.c.l.b16 %v73
  %v113 = vunpack.c.l.b16 %v74
  %v114 = vunpack.c.l.b16 %v75
  %v115 = vunpack.c.l.b16 %v76
  %v116 = vunpack.c.l.b16 %v77
  %v117 = vunpack.c.l.b16 %v78
  %v118 = vunpack.c.l.b16 %v79
  %v119 = vpack.c.b16 %v112, %v111
  %v120 = vpack.c.b16 %v114, %v113
  %v121 = vpack.c.b16 %v116, %v115
  %v122 = vpack.c.b16 %v118, %v117
  %v143 = vunpack.c.l.b16 %v80
  %v144 = vunpack.c.l.b16 %v81
  %v145 = vunpack.c.l.b16 %v82
  %v146 = vunpack.c.l.b16 %v83
  %v147 = vunpack.c.l.b16 %v84
  %v148 = vunpack.c.l.b16 %v85
  %v149 = vunpack.c.l.b16 %v86
  %v150 = vunpack.c.l.b16 %v87
  %v151 = vunpack.c.l.b16 %v88
  %v152 = vunpack.c.l.b16 %v89
  %v153 = vunpack.c.l.b16 %v90
  %v154 = vunpack.c.l.b16 %v91
  %v155 = vunpack.c.l.b16 %v92
  %v156 = vunpack.c.l.b16 %v93
  %v157 = vunpack.c.l.b16 %v94
  %v158 = vunpack.c.l.b16 %v95
  %v159 = vpack.c.b16 %v144, %v143
  %v160 = vpack.c.b16 %v146, %v145
  %v161 = vpack.c.b16 %v148, %v147
  %v162 = vpack.c.b16 %v150, %v149
  %v163 = vpack.c.b16 %v152, %v151
  %v164 = vpack.c.b16 %v154, %v153
  %v165 = vpack.c.b16 %v156, %v155
  %v166 = vpack.c.b16 %v158, %v157
  %175 = vmatprep.subr.bf16.mxu0 0
  %176 = vmatpush1.bf16.msra.mxu0 %v159
  %177 = vmatprep.subr.bf16.mxu0 0
  %178 = vmatpush1.bf16.msra.mxu0 %v160
  %179 = vmatprep.subr.bf16.mxu0 0
  %180 = vmatpush1.bf16.msra.mxu0 %v161
  %181 = vmatprep.subr.bf16.mxu0 0
  %182 = vmatpush1.bf16.msra.mxu0 %v162
  %183 = vmatprep.subr.bf16.mxu0 0
  %184 = vmatpush1.bf16.msra.mxu0 %v163
  %185 = vmatprep.subr.bf16.mxu0 0
  %186 = vmatpush1.bf16.msra.mxu0 %v164
  %187 = vmatprep.subr.bf16.mxu0 0
  %188 = vmatpush1.bf16.msra.mxu0 %v165
  %189 = vmatprep.subr.bf16.mxu0 0
  %190 = vmatpush1.bf16.msra.mxu0 %v166
  %191 = vmatprep.subr.bf16.mxu0 0
  %192 = vmatpush1.bf16.msra.mxu0 0
  %193 = vmatprep.subr.bf16.mxu0 0
  %194 = vmatpush1.bf16.msra.mxu0 0
  %195 = vmatprep.subr.bf16.mxu0 0
  %196 = vmatpush1.bf16.msra.mxu0 0
  %197 = vmatprep.subr.bf16.mxu0 0
  %198 = vmatpush1.bf16.msra.mxu0 0
  %199 = vmatprep.subr.bf16.mxu0 0
  %200 = vmatpush1.bf16.msra.mxu0 0
  %201 = vmatprep.subr.bf16.mxu0 0
  %202 = vmatpush1.bf16.msra.mxu0 0
  %203 = vmatprep.subr.bf16.mxu0 0
  %204 = vmatpush1.bf16.msra.mxu0 0
  %205 = vmatprep.subr.bf16.mxu0 0
  %206 = vmatpush1.bf16.msra.mxu0 0
  %207 = vmatprep.mubr.bf16.mxu0 0
  %208 = vmatmul.mubr.bf16.gmra.mrb[0].mxu0 %v119
  %v209 = vpop.f32.mrb[0].mxu0
  %v210 = vadd.f32 %v101, %v209
  %v211 = vpop.f32.mrb[0].mxu0
  %v212 = vpop.f32.mrb[0].mxu0
  %v213 = vadd.f32 %v101, %v212
  %v214 = vpop.f32.mrb[0].mxu0
  %215 = vmatprep.mubr.bf16.mxu0 0
  %216 = vmatmul.mubr.bf16.gmra.mrb[0].mxu0 %v120
  %v217 = vpop.f32.mrb[0].mxu0
  %v218 = vadd.f32 %v101, %v217
  %v219 = vpop.f32.mrb[0].mxu0
  %v220 = vpop.f32.mrb[0].mxu0
  %v221 = vadd.f32 %v101, %v220
  %v222 = vpop.f32.mrb[0].mxu0
  %223 = vmatprep.mubr.bf16.mxu0 0
  %224 = vmatmul.mubr.bf16.gmra.mrb[0].mxu0 %v121
  %v225 = vpop.f32.mrb[0].mxu0
  %v226 = vadd.f32 %v101, %v225
  %v227 = vpop.f32.mrb[0].mxu0
  %v228 = vpop.f32.mrb[0].mxu0
  %v229 = vadd.f32 %v101, %v228
  %v230 = vpop.f32.mrb[0].mxu0
  %231 = vmatprep.mubr.bf16.mxu0 0
  %232 = vmatmul.mubr.bf16.gmra.mrb[0].mxu0 %v122
  %v233 = vpop.f32.mrb[0].mxu0
  %v234 = vadd.f32 %v101, %v233
  %v235 = vpop.f32.mrb[0].mxu0
  %v236 = vpop.f32.mrb[0].mxu0
  %v237 = vadd.f32 %v101, %v236
  %v238 = vpop.f32.mrb[0].mxu0
  %239 = vdwg.mxu0
  %240 = vst [vmem:[#allocation2] sm:$0xff] %v210
  %241 = vst [vmem:[#allocation2 + $0x8] sm:$0xff] %v213
  %242 = vst [vmem:[#allocation2 + $0x10] sm:$0xff] %v218
  %243 = vst [vmem:[#allocation2 + $0x18] sm:$0xff] %v221
  %244 = vst [vmem:[#allocation2 + $0x20] sm:$0xff] %v226
  %245 = vst [vmem:[#allocation2 + $0x28] sm:$0xff] %v229
  %246 = vst [vmem:[#allocation2 + $0x30] sm:$0xff] %v234
  %247 = vst [vmem:[#allocation2 + $0x38] sm:$0xff] %v237
  loop: start=0, step=1, limit=8
  $region62: #{seq2seq_forward.1} parent=0 // loop_pre_header
    _
  $region63: #{seq2seq_forward.1} parent=0 // loop_header
    %s249 = sphi 0, %s253
    %p250 = scmp.ge.s32.totalorder %s249, 8
    %v254 = vphi 0.0, %v363
    %v255 = vphi 0.0, %v366
  $region64: #{seq2seq_forward.1} parent=0 // loop_header_branch
    %252 = sbr.rel (%p250) target = $region68
  $region65: #{seq2seq_forward.1} parent=0 // loop_body
    %s256 = smul.u32 %s249, 8
    %s257 = scalar_lea.vmem [#allocation2], %s256
    %v258 = vld [vmem:[%s257] sm:$0xff]
    %v259 = vpack.c.bf16 %v254, %v254
    %v260 = vld [vmem:[%s5] sm:$0xf]
    %v261 = vld [vmem:[%s5 + $0x4] sm:$0xf]
    %v262 = vld [vmem:[%s5 + $0x8] sm:$0xf]
    %v263 = vld [vmem:[%s5 + $0xc] sm:$0xf]
    %265 = vrot.lane.b32.xlu0 %v259, 32
    %v266 = vpop.permute.xlu0 %265
    %v271 = vunpack.c.l.b16 %v260
    %v272 = vunpack.c.l.b16 %v261
    %v273 = vunpack.c.l.b16 %v262
    %v274 = vunpack.c.l.b16 %v263
    %v275 = vpack.c.b16 %v272, %v271
    %v276 = vpack.c.b16 %v274, %v273
    %vm279 = vcmask 261120
    %v281 = vsel %vm279, %v266, 0
    %283 = vmatprep.subr.bf16.mxu0 0
    %284 = vmatpush1.bf16.msra.mxu0 %v275
    %285 = vmatprep.subr.bf16.mxu0 0
    %286 = vmatpush1.bf16.msra.mxu0 %v276
    %287 = vmatprep.subr.bf16.mxu0 0
    %288 = vmatpush1.bf16.msra.mxu0 0
    %289 = vmatprep.subr.bf16.mxu0 0
    %290 = vmatpush1.bf16.msra.mxu0 0
    %291 = vmatprep.subr.bf16.mxu0 0
    %292 = vmatpush1.bf16.msra.mxu0 0
    %293 = vmatprep.subr.bf16.mxu0 0
    %294 = vmatpush1.bf16.msra.mxu0 0
    %295 = vmatprep.subr.bf16.mxu0 0
    %296 = vmatpush1.bf16.msra.mxu0 0
    %297 = vmatprep.subr.bf16.mxu0 0
    %298 = vmatpush1.bf16.msra.mxu0 0
    %299 = vmatprep.subr.bf16.mxu0 0
    %300 = vmatpush1.bf16.msra.mxu0 0
    %301 = vmatprep.subr.bf16.mxu0 0
    %302 = vmatpush1.bf16.msra.mxu0 0
    %303 = vmatprep.subr.bf16.mxu0 0
    %304 = vmatpush1.bf16.msra.mxu0 0
    %305 = vmatprep.subr.bf16.mxu0 0
    %306 = vmatpush1.bf16.msra.mxu0 0
    %307 = vmatprep.subr.bf16.mxu0 0
    %308 = vmatpush1.bf16.msra.mxu0 0
    %309 = vmatprep.subr.bf16.mxu0 0
    %310 = vmatpush1.bf16.msra.mxu0 0
    %311 = vmatprep.subr.bf16.mxu0 0
    %312 = vmatpush1.bf16.msra.mxu0 0
    %313 = vmatprep.subr.bf16.mxu0 0
    %314 = vmatpush1.bf16.msra.mxu0 0
    %315 = vmatprep.mubr.bf16.mxu0 0
    %316 = vmatmul.mubr.bf16.gmra.mrb[0].mxu0 %v281
    %v317 = vpop.f32.mrb[0].mxu0
    %v318 = vadd.f32 0.0, %v317
    %v319 = vpop.f32.mrb[0].mxu0
    %v320 = vpop.f32.mrb[0].mxu0
    %v321 = vpop.f32.mrb[0].mxu0
    %322 = vdwg.mxu0
    %v323 = vadd.f32 %v258, %v318
    %v324 = vxor.u32 %v323, 2147483648
    %v325 = vmul.f32 %v324, 1.442695
    %v326 = vpow.pop %v325
    %v327 = vadd.f32 %v326, 1.0
    %v328 = vrcp.pop %v327
    %v329 = vmul.f32 1.0, %v328
    %v330 = vtanh.pop %v323
    %v331 = vmul.f32 %v329, %v255
    %333 = vrot.lane.b32.xlu0 %v330, 64
    %v334 = vpop.permute.xlu0 %333
    %v336 = vmul.f32 %v329, %v334
    %338 = vrot.lane.b32.xlu0 %v336, 32
    %v339 = vpop.permute.xlu0 %338
    %v341 = vadd.f32 %v331, %v339
    %v342 = vtanh.pop %v341
    %344 = vrot.lane.b32.xlu0 %v342, 64
    %v345 = vpop.permute.xlu0 %344
    %v347 = vmul.f32 %v329, %v345
    %s348 = scalar_lea.vmem %s1, %s256
    %v349 = vld [vmem:[%s348] sm:$0xff]
    %351 = vset.pattern.permute.xlu0 0
    %352 = vperm.xlu0 %351, %v349
    %v353 = vpop.permute.xlu0 %352
    %v355 = vmul.f32 %v353, %v347
    %v356 = vsub.f32 1.0, %v349
    %358 = vset.pattern.permute.xlu0 0
    %359 = vperm.xlu0 %358, %v356
    %v360 = vpop.permute.xlu0 %359
    %v362 = vmul.f32 %v360, %v254
    %v363 = vadd.f32 %v355, %v362
    %v364 = vmul.f32 %v353, %v341
    %v365 = vmul.f32 %v360, %v255
    %v366 = vadd.f32 %v364, %v365
    %368 = vrot.lane.b32.xlu0 %v355, 32
    %v369 = vpop.permute.xlu0 %368
    %s371 = scalar_lea.vmem [#allocation3], %s256
    %372 = vst.msk [vmem:[%s371] sm:$0xff] %vm279, %v369
  $region66: #{seq2seq_forward.1} parent=0 // loop_footer
    %s253 = sadd.s32 1, %s249
  $region67: #{seq2seq_forward.1} parent=0 // loop_footer_branch
    %248 = sbr.rel target = $region63
  $region68: #{seq2seq_forward.1} parent=0 // loop_exit
    _
  %v373 = vld [vmem:[#allocation3] sm:$0xff]
  %v375 = vcombine.high %v373, %v373
  %v377 = vunpack.c.l.s4 1966171168
  %v378 = vunpack.c.0.s8 %v377
  %v379 = vlaneseq
  %v380 = vshrl.u32 %v379, 7
  %v381 = vsub.s32 %v378, %v380
  %v382 = vrot.slane %v373, %v381
  %v384 = vunpack.c.l.s4 1966171168
  %v385 = vunpack.c.0.s8 %v384
  %v386 = vlaneseq
  %v387 = vshrl.u32 %v386, 7
  %v388 = vsub.s32 %v385, %v387
  %v389 = vrot.slane %v375, %v388
  %v390 = vcombine.high %v382, %v382
  %v391 = vcombine.high %v389, %v389
  %v393 = vunpack.c.l.s4 1966171168
  %v394 = vunpack.c.0.s8 %v393
  %v395 = vlaneseq
  %v396 = vshrl.u32 %v395, 7
  %v397 = vsub.s32 %v394, %v396
  %v398 = vrot.slane %v382, %v397
  %v400 = vunpack.c.l.s4 1966171168
  %v401 = vunpack.c.0.s8 %v400
  %v402 = vlaneseq
  %v403 = vshrl.u32 %v402, 7
  %v404 = vsub.s32 %v401, %v403
  %v405 = vrot.slane %v389, %v404
  %v407 = vunpack.c.l.s4 1966171168
  %v408 = vunpack.c.0.s8 %v407
  %v409 = vlaneseq
  %v410 = vshrl.u32 %v409, 7
  %v411 = vsub.s32 %v408, %v410
  %v412 = vrot.slane %v390, %v411
  %v414 = vunpack.c.l.s4 1966171168
  %v415 = vunpack.c.0.s8 %v414
  %v416 = vlaneseq
  %v417 = vshrl.u32 %v416, 7
  %v418 = vsub.s32 %v415, %v417
  %v419 = vrot.slane %v391, %v418
  %v420 = vcombine.high %v398, %v398
  %v421 = vcombine.high %v405, %v405
  %v422 = vcombine.high %v412, %v412
  %v423 = vcombine.high %v419, %v419
  %vm432 = vcmask 253952
  %433 = vst.msk [vmem:[#allocation4] sm:$0x1] %vm432, %v398
  %434 = vst.msk [vmem:[#allocation4 + $0x8] sm:$0x1] %vm432, %v412
  %435 = vst.msk [vmem:[#allocation4 + $0x10] sm:$0x1] %vm432, %v420
  %436 = vst.msk [vmem:[#allocation4 + $0x18] sm:$0x1] %vm432, %v422
  %437 = vst.msk [vmem:[#allocation4 + $0x20] sm:$0x1] %vm432, %v405
  %438 = vst.msk [vmem:[#allocation4 + $0x28] sm:$0x1] %vm432, %v419
  %439 = vst.msk [vmem:[#allocation4 + $0x30] sm:$0x1] %vm432, %v421
  %440 = vst.msk [vmem:[#allocation4 + $0x38] sm:$0x1] %vm432, %v423
  %s441 = scalar_lea.vmem [#allocation3], 8
  %v442 = vld [vmem:[%s441] sm:$0xff]
  %v444 = vcombine.high %v442, %v442
  %v446 = vunpack.c.l.s4 1966171168
  %v447 = vunpack.c.0.s8 %v446
  %v448 = vlaneseq
  %v449 = vshrl.u32 %v448, 7
  %v450 = vsub.s32 %v447, %v449
  %v451 = vrot.slane %v442, %v450
  %v453 = vunpack.c.l.s4 1966171168
  %v454 = vunpack.c.0.s8 %v453
  %v455 = vlaneseq
  %v456 = vshrl.u32 %v455, 7
  %v457 = vsub.s32 %v454, %v456
  %v458 = vrot.slane %v444, %v457
  %v459 = vcombine.high %v451, %v451
  %v460 = vcombine.high %v458, %v458
  %v462 = vunpack.c.l.s4 1966171168
  %v463 = vunpack.c.0.s8 %v462
  %v464 = vlaneseq
  %v465 = vshrl.u32 %v464, 7
  %v466 = vsub.s32 %v463, %v465
  %v467 = vrot.slane %v451, %v466
  %v469 = vunpack.c.l.s4 1966171168
  %v470 = vunpack.c.0.s8 %v469
  %v471 = vlaneseq
  %v472 = vshrl.u32 %v471, 7
  %v473 = vsub.s32 %v470, %v472
  %v474 = vrot.slane %v458, %v473
  %v476 = vunpack.c.l.s4 1966171168
  %v477 = vunpack.c.0.s8 %v476
  %v478 = vlaneseq
  %v479 = vshrl.u32 %v478, 7
  %v480 = vsub.s32 %v477, %v479
  %v481 = vrot.slane %v459, %v480
  %v483 = vunpack.c.l.s4 1966171168
  %v484 = vunpack.c.0.s8 %v483
  %v485 = vlaneseq
  %v486 = vshrl.u32 %v485, 7
  %v487 = vsub.s32 %v484, %v486
  %v488 = vrot.slane %v460, %v487
  %v489 = vcombine.high %v467, %v467
  %v490 = vcombine.high %v474, %v474
  %v491 = vcombine.high %v481, %v481
  %v492 = vcombine.high %v488, %v488
  %501 = vst.msk [vmem:[#allocation4 + $0x1] sm:$0x1] %vm432, %v467
  %502 = vst.msk [vmem:[#allocation4 + $0x9] sm:$0x1] %vm432, %v481
  %503 = vst.msk [vmem:[#allocation4 + $0x11] sm:$0x1] %vm432, %v489
  %504 = vst.msk [vmem:[#allocation4 + $0x19] sm:$0x1] %vm432, %v491
  %505 = vst.msk [vmem:[#allocation4 + $0x21] sm:$0x1] %vm432, %v474
  %506 = vst.msk [vmem:[#allocation4 + $0x29] sm:$0x1] %vm432, %v488
  %507 = vst.msk [vmem:[#allocation4 + $0x31] sm:$0x1] %vm432, %v490
  %508 = vst.msk [vmem:[#allocation4 + $0x39] sm:$0x1] %vm432, %v492
  %s509 = scalar_lea.vmem [#allocation3], 16
  %v510 = vld [vmem:[%s509] sm:$0xff]
  %v512 = vcombine.high %v510, %v510
  %v514 = vunpack.c.l.s4 1966171168
  %v515 = vunpack.c.0.s8 %v514
  %v516 = vlaneseq
  %v517 = vshrl.u32 %v516, 7
  %v518 = vsub.s32 %v515, %v517
  %v519 = vrot.slane %v510, %v518
  %v521 = vunpack.c.l.s4 1966171168
  %v522 = vunpack.c.0.s8 %v521
  %v523 = vlaneseq
  %v524 = vshrl.u32 %v523, 7
  %v525 = vsub.s32 %v522, %v524
  %v526 = vrot.slane %v512, %v525
  %v527 = vcombine.high %v519, %v519
  %v528 = vcombine.high %v526, %v526
  %v530 = vunpack.c.l.s4 1966171168
  %v531 = vunpack.c.0.s8 %v530
  %v532 = vlaneseq
  %v533 = vshrl.u32 %v532, 7
  %v534 = vsub.s32 %v531, %v533
  %v535 = vrot.slane %v519, %v534
  %v537 = vunpack.c.l.s4 1966171168
  %v538 = vunpack.c.0.s8 %v537
  %v539 = vlaneseq
  %v540 = vshrl.u32 %v539, 7
  %v541 = vsub.s32 %v538, %v540
  %v542 = vrot.slane %v526, %v541
  %v544 = vunpack.c.l.s4 1966171168
  %v545 = vunpack.c.0.s8 %v544
  %v546 = vlaneseq
  %v547 = vshrl.u32 %v546, 7
  %v548 = vsub.s32 %v545, %v547
  %v549 = vrot.slane %v527, %v548
  %v551 = vunpack.c.l.s4 1966171168
  %v552 = vunpack.c.0.s8 %v551
  %v553 = vlaneseq
  %v554 = vshrl.u32 %v553, 7
  %v555 = vsub.s32 %v552, %v554
  %v556 = vrot.slane %v528, %v555
  %v557 = vcombine.high %v535, %v535
  %v558 = vcombine.high %v542, %v542
  %v559 = vcombine.high %v549, %v549
  %v560 = vcombine.high %v556, %v556
  %569 = vst.msk [vmem:[#allocation4 + $0x2] sm:$0x1] %vm432, %v535
  %570 = vst.msk [vmem:[#allocation4 + $0xa] sm:$0x1] %vm432, %v549
  %571 = vst.msk [vmem:[#allocation4 + $0x12] sm:$0x1] %vm432, %v557
  %572 = vst.msk [vmem:[#allocation4 + $0x1a] sm:$0x1] %vm432, %v559
  %573 = vst.msk [vmem:[#allocation4 + $0x22] sm:$0x1] %vm432, %v542
  %574 = vst.msk [vmem:[#allocation4 + $0x2a] sm:$0x1] %vm432, %v556
  %575 = vst.msk [vmem:[#allocation4 + $0x32] sm:$0x1] %vm432, %v558
  %576 = vst.msk [vmem:[#allocation4 + $0x3a] sm:$0x1] %vm432, %v560
  %s577 = scalar_lea.vmem [#allocation3], 24
  %v578 = vld [vmem:[%s577] sm:$0xff]
  %v580 = vcombine.high %v578, %v578
  %v582 = vunpack.c.l.s4 1966171168
  %v583 = vunpack.c.0.s8 %v582
  %v584 = vlaneseq
  %v585 = vshrl.u32 %v584, 7
  %v586 = vsub.s32 %v583, %v585
  %v587 = vrot.slane %v578, %v586
  %v589 = vunpack.c.l.s4 1966171168
  %v590 = vunpack.c.0.s8 %v589
  %v591 = vlaneseq
  %v592 = vshrl.u32 %v591, 7
  %v593 = vsub.s32 %v590, %v592
  %v594 = vrot.slane %v580, %v593
  %v595 = vcombine.high %v587, %v587
  %v596 = vcombine.high %v594, %v594
  %v598 = vunpack.c.l.s4 1966171168
  %v599 = vunpack.c.0.s8 %v598
  %v600 = vlaneseq
  %v601 = vshrl.u32 %v600, 7
  %v602 = vsub.s32 %v599, %v601
  %v603 = vrot.slane %v587, %v602
  %v605 = vunpack.c.l.s4 1966171168
  %v606 = vunpack.c.0.s8 %v605
  %v607 = vlaneseq
  %v608 = vshrl.u32 %v607, 7
  %v609 = vsub.s32 %v606, %v608
  %v610 = vrot.slane %v594, %v609
  %v612 = vunpack.c.l.s4 1966171168
  %v613 = vunpack.c.0.s8 %v612
  %v614 = vlaneseq
  %v615 = vshrl.u32 %v614, 7
  %v616 = vsub.s32 %v613, %v615
  %v617 = vrot.slane %v595, %v616
  %v619 = vunpack.c.l.s4 1966171168
  %v620 = vunpack.c.0.s8 %v619
  %v621 = vlaneseq
  %v622 = vshrl.u32 %v621, 7
  %v623 = vsub.s32 %v620, %v622
  %v624 = vrot.slane %v596, %v623
  %v625 = vcombine.high %v603, %v603
  %v626 = vcombine.high %v610, %v610
  %v627 = vcombine.high %v617, %v617
  %v628 = vcombine.high %v624, %v624
  %637 = vst.msk [vmem:[#allocation4 + $0x3] sm:$0x1] %vm432, %v603
  %638 = vst.msk [vmem:[#allocation4 + $0xb] sm:$0x1] %vm432, %v617
  %639 = vst.msk [vmem:[#allocation4 + $0x13] sm:$0x1] %vm432, %v625
  %640 = vst.msk [vmem:[#allocation4 + $0x1b] sm:$0x1] %vm432, %v627
  %641 = vst.msk [vmem:[#allocation4 + $0x23] sm:$0x1] %vm432, %v610
  %642 = vst.msk [vmem:[#allocation4 + $0x2b] sm:$0x1] %vm432, %v624
  %643 = vst.msk [vmem:[#allocation4 + $0x33] sm:$0x1] %vm432, %v626
  %644 = vst.msk [vmem:[#allocation4 + $0x3b] sm:$0x1] %vm432, %v628
  %s645 = scalar_lea.vmem [#allocation3], 32
  %v646 = vld [vmem:[%s645] sm:$0xff]
  %v648 = vcombine.high %v646, %v646
  %v650 = vunpack.c.l.s4 1966171168
  %v651 = vunpack.c.0.s8 %v650
  %v652 = vlaneseq
  %v653 = vshrl.u32 %v652, 7
  %v654 = vsub.s32 %v651, %v653
  %v655 = vrot.slane %v646, %v654
  %v657 = vunpack.c.l.s4 1966171168
  %v658 = vunpack.c.0.s8 %v657
  %v659 = vlaneseq
  %v660 = vshrl.u32 %v659, 7
  %v661 = vsub.s32 %v658, %v660
  %v662 = vrot.slane %v648, %v661
  %v663 = vcombine.high %v655, %v655
  %v664 = vcombine.high %v662, %v662
  %v666 = vunpack.c.l.s4 1966171168
  %v667 = vunpack.c.0.s8 %v666
  %v668 = vlaneseq
  %v669 = vshrl.u32 %v668, 7
  %v670 = vsub.s32 %v667, %v669
  %v671 = vrot.slane %v655, %v670
  %v673 = vunpack.c.l.s4 1966171168
  %v674 = vunpack.c.0.s8 %v673
  %v675 = vlaneseq
  %v676 = vshrl.u32 %v675, 7
  %v677 = vsub.s32 %v674, %v676
  %v678 = vrot.slane %v662, %v677
  %v680 = vunpack.c.l.s4 1966171168
  %v681 = vunpack.c.0.s8 %v680
  %v682 = vlaneseq
  %v683 = vshrl.u32 %v682, 7
  %v684 = vsub.s32 %v681, %v683
  %v685 = vrot.slane %v663, %v684
  %v687 = vunpack.c.l.s4 1966171168
  %v688 = vunpack.c.0.s8 %v687
  %v689 = vlaneseq
  %v690 = vshrl.u32 %v689, 7
  %v691 = vsub.s32 %v688, %v690
  %v692 = vrot.slane %v664, %v691
  %v693 = vcombine.high %v671, %v671
  %v694 = vcombine.high %v678, %v678
  %v695 = vcombine.high %v685, %v685
  %v696 = vcombine.high %v692, %v692
  %705 = vst.msk [vmem:[#allocation4 + $0x4] sm:$0x1] %vm432, %v671
  %706 = vst.msk [vmem:[#allocation4 + $0xc] sm:$0x1] %vm432, %v685
  %707 = vst.msk [vmem:[#allocation4 + $0x14] sm:$0x1] %vm432, %v693
  %708 = vst.msk [vmem:[#allocation4 + $0x1c] sm:$0x1] %vm432, %v695
  %709 = vst.msk [vmem:[#allocation4 + $0x24] sm:$0x1] %vm432, %v678
  %710 = vst.msk [vmem:[#allocation4 + $0x2c] sm:$0x1] %vm432, %v692
  %711 = vst.msk [vmem:[#allocation4 + $0x34] sm:$0x1] %vm432, %v694
  %712 = vst.msk [vmem:[#allocation4 + $0x3c] sm:$0x1] %vm432, %v696
  %s713 = scalar_lea.vmem [#allocation3], 40
  %v714 = vld [vmem:[%s713] sm:$0xff]
  %v716 = vcombine.high %v714, %v714
  %v718 = vunpack.c.l.s4 1966171168
  %v719 = vunpack.c.0.s8 %v718
  %v720 = vlaneseq
  %v721 = vshrl.u32 %v720, 7
  %v722 = vsub.s32 %v719, %v721
  %v723 = vrot.slane %v714, %v722
  %v725 = vunpack.c.l.s4 1966171168
  %v726 = vunpack.c.0.s8 %v725
  %v727 = vlaneseq
  %v728 = vshrl.u32 %v727, 7
  %v729 = vsub.s32 %v726, %v728
  %v730 = vrot.slane %v716, %v729
  %v731 = vcombine.high %v723, %v723
  %v732 = vcombine.high %v730, %v730
  %v734 = vunpack.c.l.s4 1966171168
  %v735 = vunpack.c.0.s8 %v734
  %v736 = vlaneseq
  %v737 = vshrl.u32 %v736, 7
  %v738 = vsub.s32 %v735, %v737
  %v739 = vrot.slane %v723, %v738
  %v741 = vunpack.c.l.s4 1966171168
  %v742 = vunpack.c.0.s8 %v741
  %v743 = vlaneseq
  %v744 = vshrl.u32 %v743, 7
  %v745 = vsub.s32 %v742, %v744
  %v746 = vrot.slane %v730, %v745
  %v748 = vunpack.c.l.s4 1966171168
  %v749 = vunpack.c.0.s8 %v748
  %v750 = vlaneseq
  %v751 = vshrl.u32 %v750, 7
  %v752 = vsub.s32 %v749, %v751
  %v753 = vrot.slane %v731, %v752
  %v755 = vunpack.c.l.s4 1966171168
  %v756 = vunpack.c.0.s8 %v755
  %v757 = vlaneseq
  %v758 = vshrl.u32 %v757, 7
  %v759 = vsub.s32 %v756, %v758
  %v760 = vrot.slane %v732, %v759
  %v761 = vcombine.high %v739, %v739
  %v762 = vcombine.high %v746, %v746
  %v763 = vcombine.high %v753, %v753
  %v764 = vcombine.high %v760, %v760
  %773 = vst.msk [vmem:[#allocation4 + $0x5] sm:$0x1] %vm432, %v739
  %774 = vst.msk [vmem:[#allocation4 + $0xd] sm:$0x1] %vm432, %v753
  %775 = vst.msk [vmem:[#allocation4 + $0x15] sm:$0x1] %vm432, %v761
  %776 = vst.msk [vmem:[#allocation4 + $0x1d] sm:$0x1] %vm432, %v763
  %777 = vst.msk [vmem:[#allocation4 + $0x25] sm:$0x1] %vm432, %v746
  %778 = vst.msk [vmem:[#allocation4 + $0x2d] sm:$0x1] %vm432, %v760
  %779 = vst.msk [vmem:[#allocation4 + $0x35] sm:$0x1] %vm432, %v762
  %780 = vst.msk [vmem:[#allocation4 + $0x3d] sm:$0x1] %vm432, %v764
  %s781 = scalar_lea.vmem [#allocation3], 48
  %v782 = vld [vmem:[%s781] sm:$0xff]
  %v784 = vcombine.high %v782, %v782
  %v786 = vunpack.c.l.s4 1966171168
  %v787 = vunpack.c.0.s8 %v786
  %v788 = vlaneseq
  %v789 = vshrl.u32 %v788, 7
  %v790 = vsub.s32 %v787, %v789
  %v791 = vrot.slane %v782, %v790
  %v793 = vunpack.c.l.s4 1966171168
  %v794 = vunpack.c.0.s8 %v793
  %v795 = vlaneseq
  %v796 = vshrl.u32 %v795, 7
  %v797 = vsub.s32 %v794, %v796
  %v798 = vrot.slane %v784, %v797
  %v799 = vcombine.high %v791, %v791
  %v800 = vcombine.high %v798, %v798
  %v802 = vunpack.c.l.s4 1966171168
  %v803 = vunpack.c.0.s8 %v802
  %v804 = vlaneseq
  %v805 = vshrl.u32 %v804, 7
  %v806 = vsub.s32 %v803, %v805
  %v807 = vrot.slane %v791, %v806
  %v809 = vunpack.c.l.s4 1966171168
  %v810 = vunpack.c.0.s8 %v809
  %v811 = vlaneseq
  %v812 = vshrl.u32 %v811, 7
  %v813 = vsub.s32 %v810, %v812
  %v814 = vrot.slane %v798, %v813
  %v816 = vunpack.c.l.s4 1966171168
  %v817 = vunpack.c.0.s8 %v816
  %v818 = vlaneseq
  %v819 = vshrl.u32 %v818, 7
  %v820 = vsub.s32 %v817, %v819
  %v821 = vrot.slane %v799, %v820
  %v823 = vunpack.c.l.s4 1966171168
  %v824 = vunpack.c.0.s8 %v823
  %v825 = vlaneseq
  %v826 = vshrl.u32 %v825, 7
  %v827 = vsub.s32 %v824, %v826
  %v828 = vrot.slane %v800, %v827
  %v829 = vcombine.high %v807, %v807
  %v830 = vcombine.high %v814, %v814
  %v831 = vcombine.high %v821, %v821
  %v832 = vcombine.high %v828, %v828
  %841 = vst.msk [vmem:[#allocation4 + $0x6] sm:$0x1] %vm432, %v807
  %842 = vst.msk [vmem:[#allocation4 + $0xe] sm:$0x1] %vm432, %v821
  %843 = vst.msk [vmem:[#allocation4 + $0x16] sm:$0x1] %vm432, %v829
  %844 = vst.msk [vmem:[#allocation4 + $0x1e] sm:$0x1] %vm432, %v831
  %845 = vst.msk [vmem:[#allocation4 + $0x26] sm:$0x1] %vm432, %v814
  %846 = vst.msk [vmem:[#allocation4 + $0x2e] sm:$0x1] %vm432, %v828
  %847 = vst.msk [vmem:[#allocation4 + $0x36] sm:$0x1] %vm432, %v830
  %848 = vst.msk [vmem:[#allocation4 + $0x3e] sm:$0x1] %vm432, %v832
  %s849 = scalar_lea.vmem [#allocation3], 56
  %v850 = vld [vmem:[%s849] sm:$0xff]
  %v852 = vcombine.high %v850, %v850
  %v854 = vunpack.c.l.s4 1966171168
  %v855 = vunpack.c.0.s8 %v854
  %v856 = vlaneseq
  %v857 = vshrl.u32 %v856, 7
  %v858 = vsub.s32 %v855, %v857
  %v859 = vrot.slane %v850, %v858
  %v861 = vunpack.c.l.s4 1966171168
  %v862 = vunpack.c.0.s8 %v861
  %v863 = vlaneseq
  %v864 = vshrl.u32 %v863, 7
  %v865 = vsub.s32 %v862, %v864
  %v866 = vrot.slane %v852, %v865
  %v867 = vcombine.high %v859, %v859
  %v868 = vcombine.high %v866, %v866
  %v870 = vunpack.c.l.s4 1966171168
  %v871 = vunpack.c.0.s8 %v870
  %v872 = vlaneseq
  %v873 = vshrl.u32 %v872, 7
  %v874 = vsub.s32 %v871, %v873
  %v875 = vrot.slane %v859, %v874
  %v877 = vunpack.c.l.s4 1966171168
  %v878 = vunpack.c.0.s8 %v877
  %v879 = vlaneseq
  %v880 = vshrl.u32 %v879, 7
  %v881 = vsub.s32 %v878, %v880
  %v882 = vrot.slane %v866, %v881
  %v884 = vunpack.c.l.s4 1966171168
  %v885 = vunpack.c.0.s8 %v884
  %v886 = vlaneseq
  %v887 = vshrl.u32 %v886, 7
  %v888 = vsub.s32 %v885, %v887
  %v889 = vrot.slane %v867, %v888
  %v891 = vunpack.c.l.s4 1966171168
  %v892 = vunpack.c.0.s8 %v891
  %v893 = vlaneseq
  %v894 = vshrl.u32 %v893, 7
  %v895 = vsub.s32 %v892, %v894
  %v896 = vrot.slane %v868, %v895
  %v897 = vcombine.high %v875, %v875
  %v898 = vcombine.high %v882, %v882
  %v899 = vcombine.high %v889, %v889
  %v900 = vcombine.high %v896, %v896
  %909 = vst.msk [vmem:[#allocation4 + $0x7] sm:$0x1] %vm432, %v875
  %910 = vst.msk [vmem:[#allocation4 + $0xf] sm:$0x1] %vm432, %v889
  %911 = vst.msk [vmem:[#allocation4 + $0x17] sm:$0x1] %vm432, %v897
  %912 = vst.msk [vmem:[#allocation4 + $0x1f] sm:$0x1] %vm432, %v899
  %913 = vst.msk [vmem:[#allocation4 + $0x27] sm:$0x1] %vm432, %v882
  %914 = vst.msk [vmem:[#allocation4 + $0x2f] sm:$0x1] %vm432, %v896
  %915 = vst.msk [vmem:[#allocation4 + $0x37] sm:$0x1] %vm432, %v898
  %916 = vst.msk [vmem:[#allocation4 + $0x3f] sm:$0x1] %vm432, %v900
  %v917 = vld [vmem:[%s3] sm:$0xf]
  loop: start=0, step=1, limit=5
  $region69: #{seq2seq_forward.1} parent=0 // loop_pre_header
    _
  $region70: #{seq2seq_forward.1} parent=0 // loop_header
    %s919 = sphi 0, %s923
    %p920 = scmp.ge.s32.totalorder %s919, 5
    %v924 = vphi %v254, %v1119
    %v925 = vphi %v255, %v1113
    %v926 = vphi %v917, %v1960
  $region71: #{seq2seq_forward.1} parent=0 // loop_header_branch
    %922 = sbr.rel (%p920) target = $region75
  $region72: #{seq2seq_forward.1} parent=0 // loop_body
    %v927 = vld [vmem:[%s7] sm:$0xf]
    %v928 = vld [vmem:[%s7 + $0x4] sm:$0xf]
    %v929 = vld [vmem:[%s7 + $0x8] sm:$0xf]
    %v930 = vld [vmem:[%s7 + $0xc] sm:$0xf]
    %v931 = vld [vmem:[%s7 + $0x10] sm:$0xf]
    %v932 = vld [vmem:[%s7 + $0x14] sm:$0xf]
    %v933 = vld [vmem:[%s7 + $0x18] sm:$0xf]
    %v934 = vld [vmem:[%s7 + $0x1c] sm:$0xf]
    %v935 = vld [vmem:[%s7 + $0x20] sm:$0xf]
    %v936 = vld [vmem:[%s7 + $0x24] sm:$0xf]
    %v937 = vld [vmem:[%s7 + $0x28] sm:$0xf]
    %v938 = vld [vmem:[%s7 + $0x2c] sm:$0xf]
    %v939 = vld [vmem:[%s7 + $0x30] sm:$0xf]
    %v940 = vld [vmem:[%s7 + $0x34] sm:$0xf]
    %v941 = vld [vmem:[%s7 + $0x38] sm:$0xf]
    %v942 = vld [vmem:[%s7 + $0x3c] sm:$0xf]
    %v959 = vunpack.c.l.b16 %v927
    %v960 = vunpack.c.l.b16 %v928
    %v961 = vunpack.c.l.b16 %v929
    %v962 = vunpack.c.l.b16 %v930
    %v963 = vunpack.c.l.b16 %v931
    %v964 = vunpack.c.l.b16 %v932
    %v965 = vunpack.c.l.b16 %v933
    %v966 = vunpack.c.l.b16 %v934
    %v967 = vunpack.c.l.b16 %v935
    %v968 = vunpack.c.l.b16 %v936
    %v969 = vunpack.c.l.b16 %v937
    %v970 = vunpack.c.l.b16 %v938
    %v971 = vunpack.c.l.b16 %v939
    %v972 = vunpack.c.l.b16 %v940
    %v973 = vunpack.c.l.b16 %v941
    %v974 = vunpack.c.l.b16 %v942
    %v975 = vpack.c.b16 %v960, %v959
    %v976 = vpack.c.b16 %v962, %v961
    %v977 = vpack.c.b16 %v964, %v963
    %v978 = vpack.c.b16 %v966, %v965
    %v979 = vpack.c.b16 %v968, %v967
    %v980 = vpack.c.b16 %v970, %v969
    %v981 = vpack.c.b16 %v972, %v971
    %v982 = vpack.c.b16 %v974, %v973
    %991 = vmatprep.subr.bf16.mxu0 0
    %992 = vmatpush1.bf16.msra.mxu0 %v975
    %993 = vmatprep.subr.bf16.mxu0 0
    %994 = vmatpush1.bf16.msra.mxu0 %v976
    %995 = vmatprep.subr.bf16.mxu0 0
    %996 = vmatpush1.bf16.msra.mxu0 %v977
    %997 = vmatprep.subr.bf16.mxu0 0
    %998 = vmatpush1.bf16.msra.mxu0 %v978
    %999 = vmatprep.subr.bf16.mxu0 0
    %1000 = vmatpush1.bf16.msra.mxu0 %v979
    %1001 = vmatprep.subr.bf16.mxu0 0
    %1002 = vmatpush1.bf16.msra.mxu0 %v980
    %1003 = vmatprep.subr.bf16.mxu0 0
    %1004 = vmatpush1.bf16.msra.mxu0 %v981
    %1005 = vmatprep.subr.bf16.mxu0 0
    %1006 = vmatpush1.bf16.msra.mxu0 %v982
    %1007 = vmatprep.subr.bf16.mxu0 0
    %1008 = vmatpush1.bf16.msra.mxu0 0
    %1009 = vmatprep.subr.bf16.mxu0 0
    %1010 = vmatpush1.bf16.msra.mxu0 0
    %1011 = vmatprep.subr.bf16.mxu0 0
    %1012 = vmatpush1.bf16.msra.mxu0 0
    %1013 = vmatprep.subr.bf16.mxu0 0
    %1014 = vmatpush1.bf16.msra.mxu0 0
    %1015 = vmatprep.subr.bf16.mxu0 0
    %1016 = vmatpush1.bf16.msra.mxu0 0
    %1017 = vmatprep.subr.bf16.mxu0 0
    %1018 = vmatpush1.bf16.msra.mxu0 0
    %1019 = vmatprep.subr.bf16.mxu0 0
    %1020 = vmatpush1.bf16.msra.mxu0 0
    %1021 = vmatprep.subr.bf16.mxu0 0
    %1022 = vmatpush1.bf16.msra.mxu0 0
    %1023 = vmatprep.mubr.bf16.mxu0 0
    %1024 = vmatmul.mubr.bf16.gmra.mrb[0].mxu0 %v926
    %v1025 = vpop.f32.mrb[0].mxu0
    %v1026 = vadd.f32 %v56, %v1025
    %v1027 = vpop.f32.mrb[0].mxu0
    %v1028 = vpop.f32.mrb[0].mxu0
    %v1029 = vpop.f32.mrb[0].mxu0
    %1030 = vdwg.mxu0
    %v1031 = vpack.c.bf16 %v924, %v924
    %v1032 = vld [vmem:[%s8] sm:$0xf]
    %v1033 = vld [vmem:[%s8 + $0x4] sm:$0xf]
    %v1034 = vld [vmem:[%s8 + $0x8] sm:$0xf]
    %v1035 = vld [vmem:[%s8 + $0xc] sm:$0xf]
    %1037 = vrot.lane.b32.xlu0 %v1031, 32
    %v1038 = vpop.permute.xlu0 %1037
    %v1043 = vunpack.c.l.b16 %v1032
    %v1044 = vunpack.c.l.b16 %v1033
    %v1045 = vunpack.c.l.b16 %v1034
    %v1046 = vunpack.c.l.b16 %v1035
    %v1047 = vpack.c.b16 %v1044, %v1043
    %v1048 = vpack.c.b16 %v1046, %v1045
    %vm1051 = vcmask 261120
    %v1053 = vsel %vm1051, %v1038, 0
    %1055 = vmatprep.subr.bf16.mxu0 0
    %1056 = vmatpush1.bf16.msra.mxu0 %v1047
    %1057 = vmatprep.subr.bf16.mxu0 0
    %1058 = vmatpush1.bf16.msra.mxu0 %v1048
    %1059 = vmatprep.subr.bf16.mxu0 0
    %1060 = vmatpush1.bf16.msra.mxu0 0
    %1061 = vmatprep.subr.bf16.mxu0 0
    %1062 = vmatpush1.bf16.msra.mxu0 0
    %1063 = vmatprep.subr.bf16.mxu0 0
    %1064 = vmatpush1.bf16.msra.mxu0 0
    %1065 = vmatprep.subr.bf16.mxu0 0
    %1066 = vmatpush1.bf16.msra.mxu0 0
    %1067 = vmatprep.subr.bf16.mxu0 0
    %1068 = vmatpush1.bf16.msra.mxu0 0
    %1069 = vmatprep.subr.bf16.mxu0 0
    %1070 = vmatpush1.bf16.msra.mxu0 0
    %1071 = vmatprep.subr.bf16.mxu0 0
    %1072 = vmatpush1.bf16.msra.mxu0 0
    %1073 = vmatprep.subr.bf16.mxu0 0
    %1074 = vmatpush1.bf16.msra.mxu0 0
    %1075 = vmatprep.subr.bf16.mxu0 0
    %1076 = vmatpush1.bf16.msra.mxu0 0
    %1077 = vmatprep.subr.bf16.mxu0 0
    %1078 = vmatpush1.bf16.msra.mxu0 0
    %1079 = vmatprep.subr.bf16.mxu0 0
    %1080 = vmatpush1.bf16.msra.mxu0 0
    %1081 = vmatprep.subr.bf16.mxu0 0
    %1082 = vmatpush1.bf16.msra.mxu0 0
    %1083 = vmatprep.subr.bf16.mxu0 0
    %1084 = vmatpush1.bf16.msra.mxu0 0
    %1085 = vmatprep.subr.bf16.mxu0 0
    %1086 = vmatpush1.bf16.msra.mxu0 0
    %1087 = vmatprep.mubr.bf16.mxu0 0
    %1088 = vmatmul.mubr.bf16.gmra.mrb[0].mxu0 %v1053
    %v1089 = vpop.f32.mrb[0].mxu0
    %v1090 = vadd.f32 0.0, %v1089
    %v1091 = vpop.f32.mrb[0].mxu0
    %v1092 = vpop.f32.mrb[0].mxu0
    %v1093 = vpop.f32.mrb[0].mxu0
    %1094 = vdwg.mxu0
    %v1095 = vadd.f32 %v1026, %v1090
    %v1096 = vxor.u32 %v1095, 2147483648
    %v1097 = vmul.f32 %v1096, 1.442695
    %v1098 = vpow.pop %v1097
    %v1099 = vadd.f32 %v1098, 1.0
    %v1100 = vrcp.pop %v1099
    %v1101 = vmul.f32 1.0, %v1100
    %v1102 = vtanh.pop %v1095
    %v1103 = vmul.f32 %v1101, %v925
    %1105 = vrot.lane.b32.xlu0 %v1102, 64
    %v1106 = vpop.permute.xlu0 %1105
    %v1108 = vmul.f32 %v1101, %v1106
    %1110 = vrot.lane.b32.xlu0 %v1108, 32
    %v1111 = vpop.permute.xlu0 %1110
    %v1113 = vadd.f32 %v1103, %v1111
    %v1114 = vtanh.pop %v1113
    %1116 = vrot.lane.b32.xlu0 %v1114, 64
    %v1117 = vpop.permute.xlu0 %1116
    %v1119 = vmul.f32 %v1101, %v1117
    %v1120 = vld [vmem:[#allocation4] sm:$0xff]
    %v1121 = vld [vmem:[#allocation4 + $0x8] sm:$0xff]
    %v1122 = vld [vmem:[#allocation4 + $0x10] sm:$0xff]
    %v1123 = vld [vmem:[#allocation4 + $0x18] sm:$0xff]
    %v1124 = vld [vmem:[#allocation4 + $0x20] sm:$0xff]
    %v1125 = vld [vmem:[#allocation4 + $0x28] sm:$0xff]
    %v1126 = vld [vmem:[#allocation4 + $0x30] sm:$0xff]
    %v1127 = vld [vmem:[#allocation4 + $0x38] sm:$0xff]
    %v1129 = vcombine.high %v1119, %v1119
    %v1131 = vunpack.c.l.s4 1966171168
    %v1132 = vunpack.c.0.s8 %v1131
    %v1133 = vlaneseq
    %v1134 = vshrl.u32 %v1133, 7
    %v1135 = vsub.s32 %v1132, %v1134
    %v1136 = vrot.slane %v1119, %v1135
    %v1138 = vunpack.c.l.s4 1966171168
    %v1139 = vunpack.c.0.s8 %v1138
    %v1140 = vlaneseq
    %v1141 = vshrl.u32 %v1140, 7
    %v1142 = vsub.s32 %v1139, %v1141
    %v1143 = vrot.slane %v1129, %v1142
    %v1144 = vcombine.high %v1136, %v1136
    %v1145 = vcombine.high %v1143, %v1143
    %v1147 = vunpack.c.l.s4 1966171168
    %v1148 = vunpack.c.0.s8 %v1147
    %v1149 = vlaneseq
    %v1150 = vshrl.u32 %v1149, 7
    %v1151 = vsub.s32 %v1148, %v1150
    %v1152 = vrot.slane %v1136, %v1151
    %v1154 = vunpack.c.l.s4 1966171168
    %v1155 = vunpack.c.0.s8 %v1154
    %v1156 = vlaneseq
    %v1157 = vshrl.u32 %v1156, 7
    %v1158 = vsub.s32 %v1155, %v1157
    %v1159 = vrot.slane %v1143, %v1158
    %v1161 = vunpack.c.l.s4 1966171168
    %v1162 = vunpack.c.0.s8 %v1161
    %v1163 = vlaneseq
    %v1164 = vshrl.u32 %v1163, 7
    %v1165 = vsub.s32 %v1162, %v1164
    %v1166 = vrot.slane %v1144, %v1165
    %v1168 = vunpack.c.l.s4 1966171168
    %v1169 = vunpack.c.0.s8 %v1168
    %v1170 = vlaneseq
    %v1171 = vshrl.u32 %v1170, 7
    %v1172 = vsub.s32 %v1169, %v1171
    %v1173 = vrot.slane %v1145, %v1172
    %v1174 = vcombine.high %v1152, %v1152
    %v1175 = vcombine.high %v1159, %v1159
    %v1176 = vcombine.high %v1166, %v1166
    %v1177 = vcombine.high %v1173, %v1173
    %v1178 = vlaneseq
    %v1179 = vshrl.u32 %v1178, 7
    %v1180 = vsub.s32 0, %v1179
    %v1181 = vrot.slane %v1152, %v1180
    %v1182 = vlaneseq
    %v1183 = vshrl.u32 %v1182, 7
    %v1184 = vsub.s32 0, %v1183
    %v1185 = vrot.slane %v1166, %v1184
    %v1186 = vlaneseq
    %v1187 = vshrl.u32 %v1186, 7
    %v1188 = vsub.s32 0, %v1187
    %v1189 = vrot.slane %v1174, %v1188
    %v1190 = vlaneseq
    %v1191 = vshrl.u32 %v1190, 7
    %v1192 = vsub.s32 0, %v1191
    %v1193 = vrot.slane %v1176, %v1192
    %v1194 = vlaneseq
    %v1195 = vshrl.u32 %v1194, 7
    %v1196 = vsub.s32 0, %v1195
    %v1197 = vrot.slane %v1159, %v1196
    %v1198 = vlaneseq
    %v1199 = vshrl.u32 %v1198, 7
    %v1200 = vsub.s32 0, %v1199
    %v1201 = vrot.slane %v1173, %v1200
    %v1202 = vlaneseq
    %v1203 = vshrl.u32 %v1202, 7
    %v1204 = vsub.s32 0, %v1203
    %v1205 = vrot.slane %v1175, %v1204
    %v1206 = vlaneseq
    %v1207 = vshrl.u32 %v1206, 7
    %v1208 = vsub.s32 0, %v1207
    %v1209 = vrot.slane %v1177, %v1208
    %1210 = vrot.lane.b32.xlu0 %v1181, 32
    %v1211 = vpop.permute.xlu0 %1210
    %1212 = vrot.lane.b32.xlu0 %v1185, 32
    %v1213 = vpop.permute.xlu0 %1212
    %1214 = vrot.lane.b32.xlu0 %v1189, 32
    %v1215 = vpop.permute.xlu0 %1214
    %1216 = vrot.lane.b32.xlu0 %v1193, 32
    %v1217 = vpop.permute.xlu0 %1216
    %1218 = vrot.lane.b32.xlu0 %v1197, 32
    %v1219 = vpop.permute.xlu0 %1218
    %1220 = vrot.lane.b32.xlu0 %v1201, 32
    %v1221 = vpop.permute.xlu0 %1220
    %1222 = vrot.lane.b32.xlu0 %v1205, 32
    %v1223 = vpop.permute.xlu0 %1222
    %1224 = vrot.lane.b32.xlu0 %v1209, 32
    %v1225 = vpop.permute.xlu0 %1224
    %v1234 = vmul.f32 %v1120, %v1211
    %v1235 = vmul.f32 %v1121, %v1213
    %v1236 = vmul.f32 %v1122, %v1215
    %v1237 = vmul.f32 %v1123, %v1217
    %v1238 = vmul.f32 %v1124, %v1219
    %v1239 = vmul.f32 %v1125, %v1221
    %v1240 = vmul.f32 %v1126, %v1223
    %v1241 = vmul.f32 %v1127, %v1225
    %v1242 = vsel %vm1051, %v1234, 0.0
    %1243 = vadd.xlane.f32.xlu0 %v1242
    %v1244 = vpop.xlane.xlu0 %1243
    %v1245 = vsel %vm1051, %v1235, 0.0
    %1246 = vadd.xlane.f32.xlu0 %v1245
    %v1247 = vpop.xlane.xlu0 %1246
    %v1248 = vsel %vm1051, %v1236, 0.0
    %1249 = vadd.xlane.f32.xlu0 %v1248
    %v1250 = vpop.xlane.xlu0 %1249
    %v1251 = vsel %vm1051, %v1237, 0.0
    %1252 = vadd.xlane.f32.xlu0 %v1251
    %v1253 = vpop.xlane.xlu0 %1252
    %v1254 = vsel %vm1051, %v1238, 0.0
    %1255 = vadd.xlane.f32.xlu0 %v1254
    %v1256 = vpop.xlane.xlu0 %1255
    %v1257 = vsel %vm1051, %v1239, 0.0
    %1258 = vadd.xlane.f32.xlu0 %v1257
    %v1259 = vpop.xlane.xlu0 %1258
    %v1260 = vsel %vm1051, %v1240, 0.0
    %1261 = vadd.xlane.f32.xlu0 %v1260
    %v1262 = vpop.xlane.xlu0 %1261
    %v1263 = vsel %vm1051, %v1241, 0.0
    %1264 = vadd.xlane.f32.xlu0 %v1263
    %v1265 = vpop.xlane.xlu0 %1264
    %v1266 = vld [vmem:[%s2] sm:$0xff]
    %v1268 = vlaneseq
    %v1269 = vshrl.u32 %v1268, 7
    %v1270 = vsub.s32 0, %v1269
    %v1271 = vrot.slane %v1266, %v1270
    %1273 = vbcast.lane.b32.xlu0 %v1271, 256
    %v1274 = vpop.permute.xlu0 %1273
    %v1275 = vlaneseq
    %v1276 = vshrl.u32 %v1275, 7
    %v1277 = vsub.s32 1, %v1276
    %v1278 = vrot.slane %v1266, %v1277
    %1280 = vbcast.lane.b32.xlu0 %v1278, 256
    %v1281 = vpop.permute.xlu0 %1280
    %v1282 = vlaneseq
    %v1283 = vshrl.u32 %v1282, 7
    %v1284 = vsub.s32 2, %v1283
    %v1285 = vrot.slane %v1266, %v1284
    %1287 = vbcast.lane.b32.xlu0 %v1285, 256
    %v1288 = vpop.permute.xlu0 %1287
    %v1289 = vlaneseq
    %v1290 = vshrl.u32 %v1289, 7
    %v1291 = vsub.s32 3, %v1290
    %v1292 = vrot.slane %v1266, %v1291
    %1294 = vbcast.lane.b32.xlu0 %v1292, 256
    %v1295 = vpop.permute.xlu0 %1294
    %v1296 = vlaneseq
    %v1297 = vshrl.u32 %v1296, 7
    %v1298 = vsub.s32 4, %v1297
    %v1299 = vrot.slane %v1266, %v1298
    %1301 = vbcast.lane.b32.xlu0 %v1299, 256
    %v1302 = vpop.permute.xlu0 %1301
    %v1303 = vlaneseq
    %v1304 = vshrl.u32 %v1303, 7
    %v1305 = vsub.s32 5, %v1304
    %v1306 = vrot.slane %v1266, %v1305
    %1308 = vbcast.lane.b32.xlu0 %v1306, 256
    %v1309 = vpop.permute.xlu0 %1308
    %v1310 = vlaneseq
    %v1311 = vshrl.u32 %v1310, 7
    %v1312 = vsub.s32 6, %v1311
    %v1313 = vrot.slane %v1266, %v1312
    %1315 = vbcast.lane.b32.xlu0 %v1313, 256
    %v1316 = vpop.permute.xlu0 %1315
    %v1317 = vlaneseq
    %v1318 = vshrl.u32 %v1317, 7
    %v1319 = vsub.s32 7, %v1318
    %v1320 = vrot.slane %v1266, %v1319
    %1322 = vbcast.lane.b32.xlu0 %v1320, 256
    %v1323 = vpop.permute.xlu0 %1322
    %v1332 = vadd.f32 %v1244, %v1274
    %v1333 = vadd.f32 %v1247, %v1281
    %v1334 = vadd.f32 %v1250, %v1288
    %v1335 = vadd.f32 %v1253, %v1295
    %v1336 = vadd.f32 %v1256, %v1302
    %v1337 = vadd.f32 %v1259, %v1309
    %v1338 = vadd.f32 %v1262, %v1316
    %v1339 = vadd.f32 %v1265, %v1323
    %1348 = vset.pattern.permute.xlu0 0
    %1349 = vperm.xlu0 %1348, %v1332
    %v1350 = vpop.permute.xlu0 %1349
    %1351 = vset.pattern.permute.xlu0 0
    %1352 = vperm.xlu0 %1351, %v1333
    %v1353 = vpop.permute.xlu0 %1352
    %1354 = vset.pattern.permute.xlu0 0
    %1355 = vperm.xlu0 %1354, %v1334
    %v1356 = vpop.permute.xlu0 %1355
    %1357 = vset.pattern.permute.xlu0 0
    %1358 = vperm.xlu0 %1357, %v1335
    %v1359 = vpop.permute.xlu0 %1358
    %1360 = vset.pattern.permute.xlu0 0
    %1361 = vperm.xlu0 %1360, %v1336
    %v1362 = vpop.permute.xlu0 %1361
    %1363 = vset.pattern.permute.xlu0 0
    %1364 = vperm.xlu0 %1363, %v1337
    %v1365 = vpop.permute.xlu0 %1364
    %1366 = vset.pattern.permute.xlu0 0
    %1367 = vperm.xlu0 %1366, %v1338
    %v1368 = vpop.permute.xlu0 %1367
    %1369 = vset.pattern.permute.xlu0 0
    %1370 = vperm.xlu0 %1369, %v1339
    %v1371 = vpop.permute.xlu0 %1370
    %v1372 = vlaneseq
    %v1373 = vand.u32 %v1372, 127
    %v1374 = vlaneseq
    %v1375 = vshrl.u32 %v1374, 7
    %v1376 = vsub.s32 %v1373, %v1375
    %v1377 = vrot.slane %v1350, %v1376
    %v1378 = vlaneseq
    %v1379 = vshrl.u32 %v1378, 7
    %v1380 = vsub.s32 %v1373, %v1379
    %v1381 = vrot.slane %v1353, %v1380
    %v1382 = vlaneseq
    %v1383 = vshrl.u32 %v1382, 7
    %v1384 = vsub.s32 %v1373, %v1383
    %v1385 = vrot.slane %v1356, %v1384
    %v1386 = vlaneseq
    %v1387 = vshrl.u32 %v1386, 7
    %v1388 = vsub.s32 %v1373, %v1387
    %v1389 = vrot.slane %v1359, %v1388
    %v1390 = vlaneseq
    %v1391 = vshrl.u32 %v1390, 7
    %v1392 = vsub.s32 %v1373, %v1391
    %v1393 = vrot.slane %v1362, %v1392
    %v1394 = vlaneseq
    %v1395 = vshrl.u32 %v1394, 7
    %v1396 = vsub.s32 %v1373, %v1395
    %v1397 = vrot.slane %v1365, %v1396
    %v1398 = vlaneseq
    %v1399 = vshrl.u32 %v1398, 7
    %v1400 = vsub.s32 %v1373, %v1399
    %v1401 = vrot.slane %v1368, %v1400
    %v1402 = vlaneseq
    %v1403 = vshrl.u32 %v1402, 7
    %v1404 = vsub.s32 %v1373, %v1403
    %v1405 = vrot.slane %v1371, %v1404
    %vm1406 = vcmask 1041409
    %v1407 = vsel %vm1406, %v1381, %v1377
    %vm1408 = vcmask 1042434
    %v1409 = vsel %vm1408, %v1385, %v1407
    %vm1410 = vcmask 1043459
    %v1411 = vsel %vm1410, %v1389, %v1409
    %vm1412 = vcmask 1044484
    %v1413 = vsel %vm1412, %v1393, %v1411
    %vm1414 = vcmask 1045509
    %v1415 = vsel %vm1414, %v1397, %v1413
    %vm1416 = vcmask 1046534
    %v1417 = vsel %vm1416, %v1401, %v1415
    %vm1418 = vcmask 1047559
    %v1419 = vsel %vm1418, %v1405, %v1417
    %vm1421 = vcmask 64512
    %v1422 = vsel %vm1421, %v1419, -inf
    %1423 = vmax.xlane.f32.xlu0 %v1422
    %v1424 = vpop.xlane.xlu0 %1423
    %v1426 = vlaneseq
    %v1427 = vshrl.u32 %v1426, 7
    %v1428 = vsub.s32 0, %v1427
    %v1429 = vrot.slane %v1424, %v1428
    %v1430 = vlaneseq
    %v1431 = vshrl.u32 %v1430, 7
    %v1432 = vsub.s32 1, %v1431
    %v1433 = vrot.slane %v1424, %v1432
    %v1434 = vlaneseq
    %v1435 = vshrl.u32 %v1434, 7
    %v1436 = vsub.s32 2, %v1435
    %v1437 = vrot.slane %v1424, %v1436
    %v1438 = vlaneseq
    %v1439 = vshrl.u32 %v1438, 7
    %v1440 = vsub.s32 3, %v1439
    %v1441 = vrot.slane %v1424, %v1440
    %v1442 = vlaneseq
    %v1443 = vshrl.u32 %v1442, 7
    %v1444 = vsub.s32 4, %v1443
    %v1445 = vrot.slane %v1424, %v1444
    %v1446 = vlaneseq
    %v1447 = vshrl.u32 %v1446, 7
    %v1448 = vsub.s32 5, %v1447
    %v1449 = vrot.slane %v1424, %v1448
    %v1450 = vlaneseq
    %v1451 = vshrl.u32 %v1450, 7
    %v1452 = vsub.s32 6, %v1451
    %v1453 = vrot.slane %v1424, %v1452
    %v1454 = vlaneseq
    %v1455 = vshrl.u32 %v1454, 7
    %v1456 = vsub.s32 7, %v1455
    %v1457 = vrot.slane %v1424, %v1456
    %v1466 = vsub.f32 %v1332, %v1429
    %v1467 = vsub.f32 %v1333, %v1433
    %v1468 = vsub.f32 %v1334, %v1437
    %v1469 = vsub.f32 %v1335, %v1441
    %v1470 = vsub.f32 %v1336, %v1445
    %v1471 = vsub.f32 %v1337, %v1449
    %v1472 = vsub.f32 %v1338, %v1453
    %v1473 = vsub.f32 %v1339, %v1457
    %v1474 = vmul.f32 %v1466, 1.442695
    %v1475 = vpow.pop %v1474
    %v1476 = vmul.f32 %v1467, 1.442695
    %v1477 = vpow.pop %v1476
    %v1478 = vmul.f32 %v1468, 1.442695
    %v1479 = vpow.pop %v1478
    %v1480 = vmul.f32 %v1469, 1.442695
    %v1481 = vpow.pop %v1480
    %v1482 = vmul.f32 %v1470, 1.442695
    %v1483 = vpow.pop %v1482
    %v1484 = vmul.f32 %v1471, 1.442695
    %v1485 = vpow.pop %v1484
    %v1486 = vmul.f32 %v1472, 1.442695
    %v1487 = vpow.pop %v1486
    %v1488 = vmul.f32 %v1473, 1.442695
    %v1489 = vpow.pop %v1488
    %1498 = vset.pattern.permute.xlu0 0
    %1499 = vperm.xlu0 %1498, %v1475
    %v1500 = vpop.permute.xlu0 %1499
    %1501 = vset.pattern.permute.xlu0 0
    %1502 = vperm.xlu0 %1501, %v1477
    %v1503 = vpop.permute.xlu0 %1502
    %1504 = vset.pattern.permute.xlu0 0
    %1505 = vperm.xlu0 %1504, %v1479
    %v1506 = vpop.permute.xlu0 %1505
    %1507 = vset.pattern.permute.xlu0 0
    %1508 = vperm.xlu0 %1507, %v1481
    %v1509 = vpop.permute.xlu0 %1508
    %1510 = vset.pattern.permute.xlu0 0
    %1511 = vperm.xlu0 %1510, %v1483
    %v1512 = vpop.permute.xlu0 %1511
    %1513 = vset.pattern.permute.xlu0 0
    %1514 = vperm.xlu0 %1513, %v1485
    %v1515 = vpop.permute.xlu0 %1514
    %1516 = vset.pattern.permute.xlu0 0
    %1517 = vperm.xlu0 %1516, %v1487
    %v1518 = vpop.permute.xlu0 %1517
    %1519 = vset.pattern.permute.xlu0 0
    %1520 = vperm.xlu0 %1519, %v1489
    %v1521 = vpop.permute.xlu0 %1520
    %v1522 = vlaneseq
    %v1523 = vshrl.u32 %v1522, 7
    %v1524 = vsub.s32 %v1373, %v1523
    %v1525 = vrot.slane %v1500, %v1524
    %v1526 = vlaneseq
    %v1527 = vshrl.u32 %v1526, 7
    %v1528 = vsub.s32 %v1373, %v1527
    %v1529 = vrot.slane %v1503, %v1528
    %v1530 = vlaneseq
    %v1531 = vshrl.u32 %v1530, 7
    %v1532 = vsub.s32 %v1373, %v1531
    %v1533 = vrot.slane %v1506, %v1532
    %v1534 = vlaneseq
    %v1535 = vshrl.u32 %v1534, 7
    %v1536 = vsub.s32 %v1373, %v1535
    %v1537 = vrot.slane %v1509, %v1536
    %v1538 = vlaneseq
    %v1539 = vshrl.u32 %v1538, 7
    %v1540 = vsub.s32 %v1373, %v1539
    %v1541 = vrot.slane %v1512, %v1540
    %v1542 = vlaneseq
    %v1543 = vshrl.u32 %v1542, 7
    %v1544 = vsub.s32 %v1373, %v1543
    %v1545 = vrot.slane %v1515, %v1544
    %v1546 = vlaneseq
    %v1547 = vshrl.u32 %v1546, 7
    %v1548 = vsub.s32 %v1373, %v1547
    %v1549 = vrot.slane %v1518, %v1548
    %v1550 = vlaneseq
    %v1551 = vshrl.u32 %v1550, 7
    %v1552 = vsub.s32 %v1373, %v1551
    %v1553 = vrot.slane %v1521, %v1552
    %v1554 = vsel %vm1406, %v1529, %v1525
    %v1555 = vsel %vm1408, %v1533, %v1554
    %v1556 = vsel %vm1410, %v1537, %v1555
    %v1557 = vsel %vm1412, %v1541, %v1556
    %v1558 = vsel %vm1414, %v1545, %v1557
    %v1559 = vsel %vm1416, %v1549, %v1558
    %v1560 = vsel %vm1418, %v1553, %v1559
    %v1562 = vsel %vm1421, %v1560, 0.0
    %1563 = vadd.xlane.f32.xlu0 %v1562
    %v1564 = vpop.xlane.xlu0 %1563
    %v1565 = vmax.f32 %v1564, 1e-20
    %v1566 = vrcp.pop %v1565
    %v1568 = vlaneseq
    %v1569 = vshrl.u32 %v1568, 7
    %v1570 = vsub.s32 0, %v1569
    %v1571 = vrot.slane %v1566, %v1570
    %v1572 = vlaneseq
    %v1573 = vshrl.u32 %v1572, 7
    %v1574 = vsub.s32 1, %v1573
    %v1575 = vrot.slane %v1566, %v1574
    %v1576 = vlaneseq
    %v1577 = vshrl.u32 %v1576, 7
    %v1578 = vsub.s32 2, %v1577
    %v1579 = vrot.slane %v1566, %v1578
    %v1580 = vlaneseq
    %v1581 = vshrl.u32 %v1580, 7
    %v1582 = vsub.s32 3, %v1581
    %v1583 = vrot.slane %v1566, %v1582
    %v1584 = vlaneseq
    %v1585 = vshrl.u32 %v1584, 7
    %v1586 = vsub.s32 4, %v1585
    %v1587 = vrot.slane %v1566, %v1586
    %v1588 = vlaneseq
    %v1589 = vshrl.u32 %v1588, 7
    %v1590 = vsub.s32 5, %v1589
    %v1591 = vrot.slane %v1566, %v1590
    %v1592 = vlaneseq
    %v1593 = vshrl.u32 %v1592, 7
    %v1594 = vsub.s32 6, %v1593
    %v1595 = vrot.slane %v1566, %v1594
    %v1596 = vlaneseq
    %v1597 = vshrl.u32 %v1596, 7
    %v1598 = vsub.s32 7, %v1597
    %v1599 = vrot.slane %v1566, %v1598
    %v1608 = vmul.f32 %v1475, %v1571
    %v1609 = vmul.f32 %v1477, %v1575
    %v1610 = vmul.f32 %v1479, %v1579
    %v1611 = vmul.f32 %v1481, %v1583
    %v1612 = vmul.f32 %v1483, %v1587
    %v1613 = vmul.f32 %v1485, %v1591
    %v1614 = vmul.f32 %v1487, %v1595
    %v1615 = vmul.f32 %v1489, %v1599
    %1617 = vset.pattern.permute.xlu0 0
    %1618 = vperm.xlu0 %1617, %v1608
    %v1619 = vpop.permute.xlu0 %1618
    %1622 = vset.pattern.permute.xlu0 0
    %1623 = vperm.xlu0 %1622, %v1609
    %v1624 = vpop.permute.xlu0 %1623
    %1627 = vset.pattern.permute.xlu0 0
    %1628 = vperm.xlu0 %1627, %v1610
    %v1629 = vpop.permute.xlu0 %1628
    %1632 = vset.pattern.permute.xlu0 0
    %1633 = vperm.xlu0 %1632, %v1611
    %v1634 = vpop.permute.xlu0 %1633
    %1637 = vset.pattern.permute.xlu0 0
    %1638 = vperm.xlu0 %1637, %v1612
    %v1639 = vpop.permute.xlu0 %1638
    %1642 = vset.pattern.permute.xlu0 0
    %1643 = vperm.xlu0 %1642, %v1613
    %v1644 = vpop.permute.xlu0 %1643
    %1647 = vset.pattern.permute.xlu0 0
    %1648 = vperm.xlu0 %1647, %v1614
    %v1649 = vpop.permute.xlu0 %1648
    %1652 = vset.pattern.permute.xlu0 0
    %1653 = vperm.xlu0 %1652, %v1615
    %v1654 = vpop.permute.xlu0 %1653
    %v1656 = vmul.f32 %v1619, %v1120
    %v1657 = vmul.f32 %v1624, %v1121
    %v1658 = vmul.f32 %v1629, %v1122
    %v1659 = vmul.f32 %v1634, %v1123
    %v1660 = vmul.f32 %v1639, %v1124
    %v1661 = vmul.f32 %v1644, %v1125
    %v1662 = vmul.f32 %v1649, %v1126
    %v1663 = vmul.f32 %v1654, %v1127
    %v1664 = vsel %vm1051, %v1656, 0.0
    %v1665 = vrot.slane %v1664, 4
    %v1666 = vadd.f32 %v1664, %v1665
    %v1667 = vrot.slane %v1666, 2
    %v1668 = vadd.f32 %v1666, %v1667
    %v1669 = vrot.slane %v1668, 1
    %v1670 = vadd.f32 %v1668, %v1669
    %v1671 = vsel %vm1051, %v1657, 0.0
    %v1672 = vrot.slane %v1671, 4
    %v1673 = vadd.f32 %v1671, %v1672
    %v1674 = vrot.slane %v1673, 2
    %v1675 = vadd.f32 %v1673, %v1674
    %v1676 = vrot.slane %v1675, 1
    %v1677 = vadd.f32 %v1675, %v1676
    %v1678 = vsel %vm1051, %v1658, 0.0
    %v1679 = vrot.slane %v1678, 4
    %v1680 = vadd.f32 %v1678, %v1679
    %v1681 = vrot.slane %v1680, 2
    %v1682 = vadd.f32 %v1680, %v1681
    %v1683 = vrot.slane %v1682, 1
    %v1684 = vadd.f32 %v1682, %v1683
    %v1685 = vsel %vm1051, %v1659, 0.0
    %v1686 = vrot.slane %v1685, 4
    %v1687 = vadd.f32 %v1685, %v1686
    %v1688 = vrot.slane %v1687, 2
    %v1689 = vadd.f32 %v1687, %v1688
    %v1690 = vrot.slane %v1689, 1
    %v1691 = vadd.f32 %v1689, %v1690
    %v1692 = vsel %vm1051, %v1660, 0.0
    %v1693 = vrot.slane %v1692, 4
    %v1694 = vadd.f32 %v1692, %v1693
    %v1695 = vrot.slane %v1694, 2
    %v1696 = vadd.f32 %v1694, %v1695
    %v1697 = vrot.slane %v1696, 1
    %v1698 = vadd.f32 %v1696, %v1697
    %v1699 = vsel %vm1051, %v1661, 0.0
    %v1700 = vrot.slane %v1699, 4
    %v1701 = vadd.f32 %v1699, %v1700
    %v1702 = vrot.slane %v1701, 2
    %v1703 = vadd.f32 %v1701, %v1702
    %v1704 = vrot.slane %v1703, 1
    %v1705 = vadd.f32 %v1703, %v1704
    %v1706 = vsel %vm1051, %v1662, 0.0
    %v1707 = vrot.slane %v1706, 4
    %v1708 = vadd.f32 %v1706, %v1707
    %v1709 = vrot.slane %v1708, 2
    %v1710 = vadd.f32 %v1708, %v1709
    %v1711 = vrot.slane %v1710, 1
    %v1712 = vadd.f32 %v1710, %v1711
    %v1713 = vsel %vm1051, %v1663, 0.0
    %v1714 = vrot.slane %v1713, 4
    %v1715 = vadd.f32 %v1713, %v1714
    %v1716 = vrot.slane %v1715, 2
    %v1717 = vadd.f32 %v1715, %v1716
    %v1718 = vrot.slane %v1717, 1
    %v1719 = vadd.f32 %v1717, %v1718
    %v1720 = vpack.c.bf16 %v1670, %v1670
    %v1721 = vpack.c.bf16 %v1677, %v1677
    %v1722 = vpack.c.bf16 %v1684, %v1684
    %v1723 = vpack.c.bf16 %v1691, %v1691
    %v1724 = vpack.c.bf16 %v1698, %v1698
    %v1725 = vpack.c.bf16 %v1705, %v1705
    %v1726 = vpack.c.bf16 %v1712, %v1712
    %v1727 = vpack.c.bf16 %v1719, %v1719
    %v1728 = vld [vmem:[%s10] sm:$0xf]
    %v1729 = vld [vmem:[%s10 + $0x4] sm:$0xf]
    %v1730 = vld [vmem:[%s10 + $0x8] sm:$0xf]
    %v1731 = vld [vmem:[%s10 + $0xc] sm:$0xf]
    %v1732 = vpack.c.bf16 %v1119, %v1119
    %v1733 = vld [vmem:[%s11] sm:$0xf]
    %v1734 = vld [vmem:[%s11 + $0x4] sm:$0xf]
    %v1735 = vld [vmem:[%s11 + $0x8] sm:$0xf]
    %v1736 = vld [vmem:[%s11 + $0xc] sm:$0xf]
    %1738 = vrot.lane.b32.xlu0 %v1732, 32
    %v1739 = vpop.permute.xlu0 %1738
    %v1744 = vunpack.c.l.b16 %v1733
    %v1745 = vunpack.c.l.b16 %v1734
    %v1746 = vunpack.c.l.b16 %v1735
    %v1747 = vunpack.c.l.b16 %v1736
    %v1748 = vpack.c.b16 %v1745, %v1744
    %v1749 = vpack.c.b16 %v1747, %v1746
    %v1753 = vsel %vm1051, %v1739, 0
    %1755 = vmatprep.subr.bf16.mxu0 0
    %1756 = vmatpush1.bf16.msra.mxu0 %v1748
    %1757 = vmatprep.subr.bf16.mxu0 0
    %1758 = vmatpush1.bf16.msra.mxu0 %v1749
    %1759 = vmatprep.subr.bf16.mxu0 0
    %1760 = vmatpush1.bf16.msra.mxu0 0
    %1761 = vmatprep.subr.bf16.mxu0 0
    %1762 = vmatpush1.bf16.msra.mxu0 0
    %1763 = vmatprep.subr.bf16.mxu0 0
    %1764 = vmatpush1.bf16.msra.mxu0 0
    %1765 = vmatprep.subr.bf16.mxu0 0
    %1766 = vmatpush1.bf16.msra.mxu0 0
    %1767 = vmatprep.subr.bf16.mxu0 0
    %1768 = vmatpush1.bf16.msra.mxu0 0
    %1769 = vmatprep.subr.bf16.mxu0 0
    %1770 = vmatpush1.bf16.msra.mxu0 0
    %1771 = vmatprep.subr.bf16.mxu0 0
    %1772 = vmatpush1.bf16.msra.mxu0 0
    %1773 = vmatprep.subr.bf16.mxu0 0
    %1774 = vmatpush1.bf16.msra.mxu0 0
    %1775 = vmatprep.subr.bf16.mxu0 0
    %1776 = vmatpush1.bf16.msra.mxu0 0
    %1777 = vmatprep.subr.bf16.mxu0 0
    %1778 = vmatpush1.bf16.msra.mxu0 0
    %1779 = vmatprep.subr.bf16.mxu0 0
    %1780 = vmatpush1.bf16.msra.mxu0 0
    %1781 = vmatprep.subr.bf16.mxu0 0
    %1782 = vmatpush1.bf16.msra.mxu0 0
    %1783 = vmatprep.subr.bf16.mxu0 0
    %1784 = vmatpush1.bf16.msra.mxu0 0
    %1785 = vmatprep.subr.bf16.mxu0 0
    %1786 = vmatpush1.bf16.msra.mxu0 0
    %1787 = vmatprep.mubr.bf16.mxu0 0
    %1788 = vmatmul.mubr.bf16.gmra.mrb[0].mxu0 %v1753
    %v1789 = vpop.f32.mrb[0].mxu0
    %v1790 = vadd.f32 0.0, %v1789
    %v1791 = vpop.f32.mrb[0].mxu0
    %v1792 = vpop.f32.mrb[0].mxu0
    %v1793 = vpop.f32.mrb[0].mxu0
    %1794 = vdwg.mxu0
    %v1803 = vunpack.c.l.b16 %v1720
    %v1804 = vunpack.c.l.b16 %v1721
    %v1805 = vunpack.c.l.b16 %v1722
    %v1806 = vunpack.c.l.b16 %v1723
    %v1807 = vunpack.c.l.b16 %v1724
    %v1808 = vunpack.c.l.b16 %v1725
    %v1809 = vunpack.c.l.b16 %v1726
    %v1810 = vunpack.c.l.b16 %v1727
    %v1811 = vsel %vm1406, %v1804, %v1803
    %v1812 = vsel %vm1408, %v1805, %v1811
    %v1813 = vsel %vm1410, %v1806, %v1812
    %v1814 = vsel %vm1412, %v1807, %v1813
    %v1815 = vsel %vm1414, %v1808, %v1814
    %v1816 = vsel %vm1416, %v1809, %v1815
    %v1817 = vsel %vm1418, %v1810, %v1816
    %v1818 = vpack.c.b16 %v1817, %v1817
    %v1823 = vunpack.c.l.b16 %v1728
    %v1824 = vunpack.c.l.b16 %v1729
    %v1825 = vunpack.c.l.b16 %v1730
    %v1826 = vunpack.c.l.b16 %v1731
    %v1827 = vpack.c.b16 %v1824, %v1823
    %v1828 = vpack.c.b16 %v1826, %v1825
    %v1832 = vsel %vm1051, %v1818, 0
    %1834 = vmatprep.subr.bf16.mxu0 0
    %1835 = vmatpush1.bf16.msra.mxu0 %v1827
    %1836 = vmatprep.subr.bf16.mxu0 0
    %1837 = vmatpush1.bf16.msra.mxu0 %v1828
    %1838 = vmatprep.subr.bf16.mxu0 0
    %1839 = vmatpush1.bf16.msra.mxu0 0
    %1840 = vmatprep.subr.bf16.mxu0 0
    %1841 = vmatpush1.bf16.msra.mxu0 0
    %1842 = vmatprep.subr.bf16.mxu0 0
    %1843 = vmatpush1.bf16.msra.mxu0 0
    %1844 = vmatprep.subr.bf16.mxu0 0
    %1845 = vmatpush1.bf16.msra.mxu0 0
    %1846 = vmatprep.subr.bf16.mxu0 0
    %1847 = vmatpush1.bf16.msra.mxu0 0
    %1848 = vmatprep.subr.bf16.mxu0 0
    %1849 = vmatpush1.bf16.msra.mxu0 0
    %1850 = vmatprep.subr.bf16.mxu0 0
    %1851 = vmatpush1.bf16.msra.mxu0 0
    %1852 = vmatprep.subr.bf16.mxu0 0
    %1853 = vmatpush1.bf16.msra.mxu0 0
    %1854 = vmatprep.subr.bf16.mxu0 0
    %1855 = vmatpush1.bf16.msra.mxu0 0
    %1856 = vmatprep.subr.bf16.mxu0 0
    %1857 = vmatpush1.bf16.msra.mxu0 0
    %1858 = vmatprep.subr.bf16.mxu0 0
    %1859 = vmatpush1.bf16.msra.mxu0 0
    %1860 = vmatprep.subr.bf16.mxu0 0
    %1861 = vmatpush1.bf16.msra.mxu0 0
    %1862 = vmatprep.subr.bf16.mxu0 0
    %1863 = vmatpush1.bf16.msra.mxu0 0
    %1864 = vmatprep.subr.bf16.mxu0 0
    %1865 = vmatpush1.bf16.msra.mxu0 0
    %1866 = vmatprep.mubr.bf16.mxu0 0
    %1867 = vmatmul.mubr.bf16.gmra.mrb[0].mxu0 %v1832
    %v1868 = vpop.f32.mrb[0].mxu0
    %v1869 = vadd.f32 %v1790, %v1868
    %v1870 = vpop.f32.mrb[0].mxu0
    %v1871 = vpop.f32.mrb[0].mxu0
    %v1872 = vpop.f32.mrb[0].mxu0
    %1873 = vdwg.mxu0
    %v1874 = vadd.f32 %v1869, %v63
    %v1875 = vtanh.pop %v1874
    %v1876 = vpack.c.bf16 %v1875, %v1875
    %v1877 = vld [vmem:[%s13] sm:$0xf]
    %v1878 = vld [vmem:[%s13 + $0x4] sm:$0xf]
    %v1879 = vld [vmem:[%s13 + $0x8] sm:$0xf]
    %v1880 = vld [vmem:[%s13 + $0xc] sm:$0xf]
    %v1885 = vunpack.c.l.b16 %v1877
    %v1886 = vunpack.c.l.b16 %v1878
    %v1887 = vunpack.c.l.b16 %v1879
    %v1888 = vunpack.c.l.b16 %v1880
    %v1889 = vpack.c.b16 %v1886, %v1885
    %v1890 = vpack.c.b16 %v1888, %v1887
    %v1894 = vsel %vm1051, %v1876, 0
    %1896 = vmatprep.subr.bf16.mxu0 0
    %1897 = vmatpush1.bf16.msra.mxu0 %v1889
    %1898 = vmatprep.subr.bf16.mxu0 0
    %1899 = vmatpush1.bf16.msra.mxu0 %v1890
    %1900 = vmatprep.subr.bf16.mxu0 0
    %1901 = vmatpush1.bf16.msra.mxu0 0
    %1902 = vmatprep.subr.bf16.mxu0 0
    %1903 = vmatpush1.bf16.msra.mxu0 0
    %1904 = vmatprep.subr.bf16.mxu0 0
    %1905 = vmatpush1.bf16.msra.mxu0 0
    %1906 = vmatprep.subr.bf16.mxu0 0
    %1907 = vmatpush1.bf16.msra.mxu0 0
    %1908 = vmatprep.subr.bf16.mxu0 0
    %1909 = vmatpush1.bf16.msra.mxu0 0
    %1910 = vmatprep.subr.bf16.mxu0 0
    %1911 = vmatpush1.bf16.msra.mxu0 0
    %1912 = vmatprep.subr.bf16.mxu0 0
    %1913 = vmatpush1.bf16.msra.mxu0 0
    %1914 = vmatprep.subr.bf16.mxu0 0
    %1915 = vmatpush1.bf16.msra.mxu0 0
    %1916 = vmatprep.subr.bf16.mxu0 0
    %1917 = vmatpush1.bf16.msra.mxu0 0
    %1918 = vmatprep.subr.bf16.mxu0 0
    %1919 = vmatpush1.bf16.msra.mxu0 0
    %1920 = vmatprep.subr.bf16.mxu0 0
    %1921 = vmatpush1.bf16.msra.mxu0 0
    %1922 = vmatprep.subr.bf16.mxu0 0
    %1923 = vmatpush1.bf16.msra.mxu0 0
    %1924 = vmatprep.subr.bf16.mxu0 0
    %1925 = vmatpush1.bf16.msra.mxu0 0
    %1926 = vmatprep.subr.bf16.mxu0 0
    %1927 = vmatpush1.bf16.msra.mxu0 0
    %1928 = vmatprep.mubr.bf16.mxu0 0
    %1929 = vmatmul.mubr.bf16.gmra.mrb[0].mxu0 %v1894
    %v1930 = vpop.f32.mrb[0].mxu0
    %v1931 = vadd.f32 %v70, %v1930
    %v1932 = vpop.f32.mrb[0].mxu0
    %v1933 = vpop.f32.mrb[0].mxu0
    %v1934 = vpop.f32.mrb[0].mxu0
    %1935 = vdwg.mxu0
    %s1936 = smul.u32 %s919, 8
    %s1937 = scalar_lea.vmem %s15, %s1936
    %1938 = vst [vmem:[%s1937] sm:$0xff] %v1931
    %1939 = vmax.xlane.f32.xlu0 %v1931
    %v1940 = vpop.xlane.xlu0 %1939
    %vm1941 = vcmp.ge.f32.partialorder %v1931, %v1940
    %v1942 = vsel %vm1941, %v1373, 128
    %v1943 = vand.u32 %v1942, 65535
    %v1944 = vshra.s32 %v1942, 16
    %v1945 = vcvt.s32.f32 %v1943
    %v1946 = vcvt.s32.f32 %v1944
    %1947 = vmin.xlane.f32.xlu0 %v1946
    %v1948 = vpop.xlane.xlu0 %1947
    %vm1949 = vcmp.eq.f32.partialorder %v1946, %v1948
    %v1950 = vsel %vm1949, %v1945, inf
    %1951 = vmin.xlane.f32.xlu0 %v1950
    %v1952 = vpop.xlane.xlu0 %1951
    %v1953 = vcvt.f32.s32 %v1952
    %v1954 = vcvt.f32.s32 %v1948
    %v1955 = vshll.u32 %v1954, 16
    %v1956 = vadd.s32 %v1955, %v1953
    %vm1957 = vcmp.eq.s32.totalorder %v1373, %v1956
    %v1958 = vsel %vm1957, 1, 0
    %v1959 = vcvt.s32.f32 %v1958
    %v1960 = vpack.c.bf16 %v1959, %v1959
  $region73: #{seq2seq_forward.1} parent=0 // loop_footer
    %s923 = sadd.s32 1, %s919
  $region74: #{seq2seq_forward.1} parent=0 // loop_footer_branch
    %918 = sbr.rel target = $region70
  $region75: #{seq2seq_forward.1} parent=0 // loop_exit
    _
  // Predicated region
  $region76: #{seq2seq_forward.1} parent=0 // pred_check
    _
  $region77: #{seq2seq_forward.1} parent=0 // pred_check_branch
    %1962 = sbr.rel (0) target = $region79
  $region78: #{seq2seq_forward.1} parent=0 // pred_region
    _
  $region79: #{seq2seq_forward.1} parent=0 // pred_fallthru
    _
  // Predicated region
  $region80: #{seq2seq_forward.1} parent=0 // pred_check
    _
  $region81: #{seq2seq_forward.1} parent=0 // pred_check_branch
    %1964 = sbr.rel (0) target = $region83
  $region82: #{seq2seq_forward.1} parent=0 // pred_region
    _
  $region83: #{seq2seq_forward.1} parent=0 // pred_fallthru
    _

</llo_original>
